<compile_context>
chip_gen: v7x
topology: tpu7x:2x2x1
jax: 0.10.0
libtpu: 0.0.40
codegen_flags: <defaults>
</compile_context>

<pallas_src>
import math

import jax
import jax.numpy as jnp
from jax import lax
from jax.experimental import pallas as pl
from jax.experimental.pallas import tpu as pltpu

N_GROUPS = 32
GN_EPS = 1e-5
LANE = 128


def _round_up(x, m):
    return (x + m - 1) // m * m


def _pick_tile(hw, candidates=(512, 256, 128)):
    # TODO(synk): for large HW not divisible by 128, pad the sequence and mask padded keys
    #             instead of falling back to a single whole-sequence tile.
    for cand in candidates:
        if hw % cand == 0:
            return cand
    return hw  # whole sequence: never fall back to tiny tiles


def _vmem_limit_bytes():
    # ~3/4 of physical VMEM: ~48 MiB on v7x (64 MiB/TC), ~96 MiB on v5e/v6e (128 MiB).
    try:
        cap = int(pltpu.get_tpu_info().vmem_capacity_bytes)
        return int(cap * 3 // 4)
    except Exception:
        return 48 * 1024 * 1024


# ---------------------------------------------------------------------------
# Pass 1: GroupNorm (folded scale/shift) + fused QKV projection, tiled over HW
# ---------------------------------------------------------------------------
def gn_qkv_kernel(x_ref, scale_ref, shift_ref, wqkv_ref, bqkv_ref,
                  q_ref, k_ref, v_ref):
    cdt = wqkv_ref.dtype
    cp = x_ref.shape[-1]
    # GroupNorm as one FMA: scale = gamma * rsqrt(var+eps), shift = beta - mean*scale
    xn = x_ref[0] * scale_ref[0] + shift_ref[0]                        # (TS, Cp) f32
    # fused [q|k|v] projection; 1/sqrt(C) already folded into the q columns/bias.
    qkv = jnp.dot(xn.astype(cdt), wqkv_ref[...],
                  preferred_element_type=jnp.float32) + bqkv_ref[...]  # (TS, 3Cp) f32
    # Cp is a multiple of 128 -> lane-aligned slices, lane-dense stores.
    q_ref[0] = qkv[:, :cp].astype(cdt)
    k_ref[0] = qkv[:, cp:2 * cp].astype(cdt)
    v_ref[0] = qkv[:, 2 * cp:].astype(cdt)


# ---------------------------------------------------------------------------
# Pass 2: flash-style attention + output projection + residual, tiled (Q, KV)
# ---------------------------------------------------------------------------
def attn_kernel(x_ref, q_ref, k_ref, v_ref, wo_ref, bo_ref, out_ref,
                m_sc, l_sc, acc_sc):
    kv = pl.program_id(2)
    cdt = q_ref.dtype

    @pl.when(kv == 0)
    def _():
        m_sc[...] = jnp.full_like(m_sc, -jnp.inf)
        l_sc[...] = jnp.zeros_like(l_sc)
        acc_sc[...] = jnp.zeros_like(acc_sc)

    q = q_ref[0]                                                        # (TQ, Cp) cdt
    k = k_ref[0]                                                        # (TK, Cp) cdt
    v = v_ref[0]                                                        # (TK, Cp) cdt

    # q @ k^T by contracting the last dims of both -> no explicit transpose of k.
    s = lax.dot_general(q, k, (((1,), (1,)), ((), ())),
                        preferred_element_type=jnp.float32)             # (TQ, TK) f32

    m_prev = m_sc[...]
    m_new = jnp.maximum(m_prev, jnp.max(s, axis=-1, keepdims=True))
    alpha = jnp.exp(m_prev - m_new)
    # exponentials in the compute dtype (bf16 EUP on v6e/v7x); f32 on the f32 path.
    p = jnp.exp((s - m_new).astype(cdt))                                 # (TQ, TK) cdt
    # TODO(synk): fuse the row-sum into the AV matmul (ones column) if XLU saturates.
    l_sc[...] = alpha * l_sc[...] + jnp.sum(p.astype(jnp.float32),
                                            axis=-1, keepdims=True)
    acc_sc[...] = alpha * acc_sc[...] + jnp.dot(p, v,
                                                preferred_element_type=jnp.float32)
    m_sc[...] = m_new

    @pl.when(kv == pl.num_programs(2) - 1)
    def _():
        # normalize AFTER the AV accumulation; exact reciprocal on the f32 path.
        inv_l = pl.reciprocal(l_sc[...], approx=(cdt != jnp.float32))
        o = (acc_sc[...] * inv_l).astype(cdt)                            # (TQ, Cp)
        y = jnp.dot(o, wo_ref[...], preferred_element_type=jnp.float32) + bo_ref[...]
        out_ref[0] = y + x_ref[0]                                        # residual (f32)


def attention_block(x_nchw, params, *, compute_dtype=jnp.bfloat16,
                    seq_tile=None, q_tile=None, kv_tile=None):
    """x_nchw: (N, C, H, W) float32. Returns (N, C, H, W) float32."""
    n, c, h, w = x_nchw.shape
    hw = h * w
    assert c % N_GROUPS == 0, "GroupNorm(32, C) requires C % 32 == 0"

    c_pad = max(_round_up(c, LANE), LANE)
    ts = seq_tile or _pick_tile(hw)
    tq = q_tile or _pick_tile(hw)
    tk = kv_tile or _pick_tile(hw)
    vmem_limit = _vmem_limit_bytes()

    x_f32 = x_nchw.astype(jnp.float32)

    # --- GroupNorm statistics (cheap f32 reduction; folded to per-channel scale/shift) ---
    cpg = c // N_GROUPS
    xg = x_f32.reshape(n, N_GROUPS, cpg, h, w)
    mean_g = jnp.mean(xg, axis=(2, 3, 4))                      # (N, G)
    var_g = jnp.var(xg, axis=(2, 3, 4))                        # (N, G)
    inv_g = lax.rsqrt(var_g + jnp.float32(GN_EPS))             # (N, G)
    mean_c = jnp.repeat(mean_g, cpg, axis=1)                   # (N, C)
    inv_c = jnp.repeat(inv_g, cpg, axis=1)                     # (N, C)
    gamma = params["gn_weight"].reshape(1, c).astype(jnp.float32)
    beta = params["gn_bias"].reshape(1, c).astype(jnp.float32)
    scale_c = gamma * inv_c                                     # (N, C)
    shift_c = beta - mean_c * scale_c                           # (N, C)
    scale_p = jnp.zeros((n, 1, c_pad), jnp.float32).at[:, 0, :c].set(scale_c)
    shift_p = jnp.zeros((n, 1, c_pad), jnp.float32).at[:, 0, :c].set(shift_c)

    # --- glue: NCHW -> (N, HW, C_pad) ---
    # TODO(synk): keep the surrounding model NHWC (or fold the layout change into the in/out
    #             index_maps) to avoid these two extra HBM passes per call.
    x_seq = jnp.transpose(x_f32.reshape(n, c, hw), (0, 2, 1))
    if c_pad != c:
        x_seq = jnp.pad(x_seq, ((0, 0), (0, 0), (0, c_pad - c)))

    # --- weights: PyTorch Linear y = x @ W.T + b; pad C -> C_pad, fold 1/sqrt(C) into q ---
    scl = 1.0 / math.sqrt(c)

    def pad_wt(wt):  # (C_out, C_in) torch layout -> (C_pad, C_pad), transposed + zero padded
        out = jnp.zeros((c_pad, c_pad), jnp.float32)
        return out.at[:c, :c].set(wt.astype(jnp.float32).T)

    def pad_b(b):
        return jnp.zeros((c_pad,), jnp.float32).at[:c].set(b.astype(jnp.float32))

    w_in = params["in_proj_weight"]                             # (3C, C)
    b_in = params["in_proj_bias"]                               # (3C,)
    wqkv = jnp.concatenate([pad_wt(w_in[:c] * scl), pad_wt(w_in[c:2 * c]),
                            pad_wt(w_in[2 * c:])], axis=1)       # (C_pad, 3*C_pad)
    bqkv = jnp.concatenate([pad_b(b_in[:c] * scl), pad_b(b_in[c:2 * c]),
                            pad_b(b_in[2 * c:])]).reshape(1, 3 * c_pad)
    wo = pad_wt(params["out_proj_weight"])                       # (C_pad, C_pad)
    bo = pad_b(params["out_proj_bias"]).reshape(1, c_pad)

    wqkv = wqkv.astype(compute_dtype)
    wo = wo.astype(compute_dtype)

    # ----------------------- pass 1: GroupNorm + fused QKV projection -----------------------
    # NOTE: constant-index weight blocks are still double-buffered by the pipeliner;
    #       single-buffering (pl.Buffered(1)) left as a follow-up.
    qkv_shape = jax.ShapeDtypeStruct((n, hw, c_pad), compute_dtype)
    q_all, k_all, v_all = pl.pallas_call(
        gn_qkv_kernel,
        out_shape=(qkv_shape, qkv_shape, qkv_shape),
        grid=(n, hw // ts),
        in_specs=[
            pl.BlockSpec((1, ts, c_pad), lambda i, s: (i, s, 0)),        # x
            pl.BlockSpec((1, 1, c_pad), lambda i, s: (i, 0, 0)),         # GN scale
            pl.BlockSpec((1, 1, c_pad), lambda i, s: (i, 0, 0)),         # GN shift
            pl.BlockSpec((c_pad, 3 * c_pad), lambda i, s: (0, 0)),       # fused Wqkv
            pl.BlockSpec((1, 3 * c_pad), lambda i, s: (0, 0)),           # fused bqkv
        ],
        out_specs=(
            pl.BlockSpec((1, ts, c_pad), lambda i, s: (i, s, 0)),        # q
            pl.BlockSpec((1, ts, c_pad), lambda i, s: (i, s, 0)),        # k
            pl.BlockSpec((1, ts, c_pad), lambda i, s: (i, s, 0)),        # v
        ),
        compiler_params=pltpu.CompilerParams(
            dimension_semantics=("parallel", "parallel"),
            vmem_limit_bytes=vmem_limit,
        ),
    )(x_seq, scale_p, shift_p, wqkv, bqkv)

    # ------------- pass 2: flash attention + output projection + residual -------------
    out_pad = pl.pallas_call(
        attn_kernel,
        out_shape=jax.ShapeDtypeStruct((n, hw, c_pad), jnp.float32),
        grid=(n, hw // tq, hw // tk),
        in_specs=[
            pl.BlockSpec((1, tq, c_pad), lambda i, qi, ki: (i, qi, 0)),  # residual x
            pl.BlockSpec((1, tq, c_pad), lambda i, qi, ki: (i, qi, 0)),  # q
            pl.BlockSpec((1, tk, c_pad), lambda i, qi, ki: (i, ki, 0)),  # k
            pl.BlockSpec((1, tk, c_pad), lambda i, qi, ki: (i, ki, 0)),  # v
            pl.BlockSpec((c_pad, c_pad), lambda i, qi, ki: (0, 0)),      # Wo
            pl.BlockSpec((1, c_pad), lambda i, qi, ki: (0, 0)),          # bo
        ],
        out_specs=pl.BlockSpec((1, tq, c_pad), lambda i, qi, ki: (i, qi, 0)),
        scratch_shapes=[
            pltpu.VMEM((tq, 1), jnp.float32),       # running max
            pltpu.VMEM((tq, 1), jnp.float32),       # running denom
            pltpu.VMEM((tq, c_pad), jnp.float32),   # running numerator
        ],
        compiler_params=pltpu.CompilerParams(
            dimension_semantics=("parallel", "parallel", "arbitrary"),
            vmem_limit_bytes=vmem_limit,
        ),
    )(x_seq, q_all, k_all, v_all, wo, bo)

    # --- glue: (N, HW, C_pad) -> NCHW ---
    out = out_pad[:, :, :c]
    return jnp.transpose(out, (0, 2, 1)).reshape(n, c, h, w)


def _reference(x_nchw, params):
    """Pure-JAX f32 reference of the PyTorch module."""
    n, c, h, w = x_nchw.shape
    hw = h * w
    cpg = c // N_GROUPS
    xg = x_nchw.reshape(n, N_GROUPS, cpg, h, w)
    mean = jnp.mean(xg, axis=(2, 3, 4), keepdims=True)
    var = jnp.var(xg, axis=(2, 3, 4), keepdims=True)
    xn = ((xg - mean) / jnp.sqrt(var + GN_EPS)).reshape(n, c, h, w)
    xn = xn * params["gn_weight"].reshape(1, c, 1, 1) + params["gn_bias"].reshape(1, c, 1, 1)
    xs = jnp.transpose(xn.reshape(n, c, hw), (0, 2, 1))            # (N, HW, C)
    qkv = jnp.einsum("nsc,oc->nso", xs, params["in_proj_weight"]) + params["in_proj_bias"]
    q, k, v = jnp.split(qkv, 3, axis=-1)
    scores = jnp.einsum("nqc,nkc->nqk", q, k) / math.sqrt(c)
    attn = jax.nn.softmax(scores, axis=-1)
    o = jnp.einsum("nqk,nkc->nqc", attn, v)
    y = jnp.einsum("nsc,oc->nso", o, params["out_proj_weight"]) + params["out_proj_bias"]
    y = jnp.transpose(y, (0, 2, 1)).reshape(n, c, h, w)
    return y + x_nchw


if __name__ == "__main__":
    key = jax.random.PRNGKey(0)
    N, C, H, W = 2, 64, 16, 16   # C must be divisible by 32 (GroupNorm(32, C))

    k_x, k_gw, k_gb, k_iw, k_ib, k_ow, k_ob = jax.random.split(key, 7)
    x = jax.random.normal(k_x, (N, C, H, W), dtype=jnp.float32)

    params = {
        "gn_weight": 1.0 + 0.05 * jax.random.normal(k_gw, (C,), dtype=jnp.float32),
        "gn_bias": 0.05 * jax.random.normal(k_gb, (C,), dtype=jnp.float32),
        "in_proj_weight": 0.05 * jax.random.normal(k_iw, (3 * C, C), dtype=jnp.float32),
        "in_proj_bias": 0.05 * jax.random.normal(k_ib, (3 * C,), dtype=jnp.float32),
        "out_proj_weight": 0.05 * jax.random.normal(k_ow, (C, C), dtype=jnp.float32),
        "out_proj_bias": 0.05 * jax.random.normal(k_ob, (C,), dtype=jnp.float32),
    }

    ref = jax.block_until_ready(_reference(x, params))

    # f32 MXU path: tight check (f32 exponentials, exact reciprocal)
    out_f32 = jax.block_until_ready(attention_block(x, params, compute_dtype=jnp.float32))
    assert out_f32.shape == (N, C, H, W)
    err_f32 = float(jnp.max(jnp.abs(out_f32 - ref)))
    assert err_f32 < 2e-3, err_f32

    # bf16 MXU path (default on v6e/v7x): bf16 matmuls + bf16 exponentials, f32 accumulation
    out_bf16 = jax.block_until_ready(attention_block(x, params, compute_dtype=jnp.bfloat16))
    err_bf16 = float(jnp.max(jnp.abs(out_bf16 - ref)))
    assert err_bf16 < 3e-2, err_bf16

    print("KERNEL_OK")
</pallas_src>

<mosaic_0001>
module attributes {stable_mosaic.version = 11 : i64} {
  func.func @gn_qkv_kernel(%arg0: i32, %arg1: i32, %arg2: memref<1x256x128xf32, #tpu.memory_space<vmem>>, %arg3: memref<1x1x128xf32, #tpu.memory_space<vmem>>, %arg4: memref<1x1x128xf32, #tpu.memory_space<vmem>>, %arg5: memref<128x384xf32, #tpu.memory_space<vmem>>, %arg6: memref<1x384xf32, #tpu.memory_space<vmem>>, %arg7: memref<1x256x128xf32, #tpu.memory_space<vmem>>, %arg8: memref<1x256x128xf32, #tpu.memory_space<vmem>>, %arg9: memref<1x256x128xf32, #tpu.memory_space<vmem>>) attributes {dimension_semantics = [#tpu.dimension_semantics<parallel>, #tpu.dimension_semantics<parallel>], iteration_bounds = array<i64: 2, 1>, scalar_prefetch = 0 : i64, scratch_operands = 0 : i64, tpu.core_type = #tpu.core_type<tc>, window_params = [{transform_indices = @transform_0, window_bounds = array<i64: 1, 256, 128>}, {transform_indices = @transform_1, window_bounds = array<i64: 1, 1, 128>}, {transform_indices = @transform_2, window_bounds = array<i64: 1, 1, 128>}, {pipeline_mode = #tpu.pipeline_mode<synchronous>, transform_indices = @transform_3, window_bounds = array<i64: 128, 384>}, {pipeline_mode = #tpu.pipeline_mode<synchronous>, transform_indices = @transform_4, window_bounds = array<i64: 1, 384>}, {transform_indices = @transform_5, window_bounds = array<i64: 1, 256, 128>}, {transform_indices = @transform_6, window_bounds = array<i64: 1, 256, 128>}, {transform_indices = @transform_7, window_bounds = array<i64: 1, 256, 128>}]} {
    %c0 = arith.constant 0 : index
    %c0_0 = arith.constant 0 : index
    %c0_1 = arith.constant 0 : index
    %0 = vector.load %arg2[%c0, %c0_0, %c0_1] : memref<1x256x128xf32, #tpu.memory_space<vmem>>, vector<1x256x128xf32>
    %1 = vector.shape_cast %0 : vector<1x256x128xf32> to vector<256x128xf32>
    %c0_2 = arith.constant 0 : index
    %c0_3 = arith.constant 0 : index
    %c0_4 = arith.constant 0 : index
    %2 = vector.load %arg3[%c0_2, %c0_3, %c0_4] : memref<1x1x128xf32, #tpu.memory_space<vmem>>, vector<1x1x128xf32>
    %3 = vector.shape_cast %2 : vector<1x1x128xf32> to vector<1x128xf32>
    %4 = vector.broadcast %3 : vector<1x128xf32> to vector<256x128xf32>
    %5 = arith.mulf %1, %4 : vector<256x128xf32>
    %c0_5 = arith.constant 0 : index
    %c0_6 = arith.constant 0 : index
    %c0_7 = arith.constant 0 : index
    %6 = vector.load %arg4[%c0_5, %c0_6, %c0_7] : memref<1x1x128xf32, #tpu.memory_space<vmem>>, vector<1x1x128xf32>
    %7 = vector.shape_cast %6 : vector<1x1x128xf32> to vector<1x128xf32>
    %8 = vector.broadcast %7 : vector<1x128xf32> to vector<256x128xf32>
    %9 = arith.addf %5, %8 : vector<256x128xf32>
    %c0_8 = arith.constant 0 : index
    %c0_9 = arith.constant 0 : index
    %10 = vector.load %arg5[%c0_8, %c0_9] : memref<128x384xf32, #tpu.memory_space<vmem>>, vector<128x384xf32>
    %cst = arith.constant dense<0.000000e+00> : vector<256x384xf32>
    %11 = tpu.matmul %9, %10, %cst {dimension_numbers = #tpu.dot_dimension_numbers<[1], [0], [0], [1], [0, 0, 1, 1], [], []>} : vector<256x128xf32>, vector<128x384xf32>, vector<256x384xf32> -> vector<256x384xf32>
    %c0_10 = arith.constant 0 : index
    %c0_11 = arith.constant 0 : index
    %12 = vector.load %arg6[%c0_10, %c0_11] : memref<1x384xf32, #tpu.memory_space<vmem>>, vector<1x384xf32>
    %13 = vector.broadcast %12 : vector<1x384xf32> to vector<256x384xf32>
    %14 = arith.addf %11, %13 : vector<256x384xf32>
    %15 = vector.extract_strided_slice %14 {offsets = [0, 0], sizes = [256, 128], strides = [1, 1]} : vector<256x384xf32> to vector<256x128xf32>
    %c0_12 = arith.constant 0 : index
    %c0_13 = arith.constant 0 : index
    %c0_14 = arith.constant 0 : index
    %16 = vector.load %arg7[%c0_12, %c0_13, %c0_14] : memref<1x256x128xf32, #tpu.memory_space<vmem>>, vector<1x256x128xf32>
    %17 = vector.shape_cast %16 : vector<1x256x128xf32> to vector<256x128xf32>
    %18 = vector.shape_cast %15 : vector<256x128xf32> to vector<1x256x128xf32>
    tpu.vector_store %arg7[%c0_12, %c0_13, %c0_14], %18 {strides = array<i32>} : memref<1x256x128xf32, #tpu.memory_space<vmem>>, vector<1x256x128xf32>,
    %19 = vector.extract_strided_slice %14 {offsets = [0, 128], sizes = [256, 128], strides = [1, 1]} : vector<256x384xf32> to vector<256x128xf32>
    %c0_15 = arith.constant 0 : index
    %c0_16 = arith.constant 0 : index
    %c0_17 = arith.constant 0 : index
    %20 = vector.load %arg8[%c0_15, %c0_16, %c0_17] : memref<1x256x128xf32, #tpu.memory_space<vmem>>, vector<1x256x128xf32>
    %21 = vector.shape_cast %20 : vector<1x256x128xf32> to vector<256x128xf32>
    %22 = vector.shape_cast %19 : vector<256x128xf32> to vector<1x256x128xf32>
    tpu.vector_store %arg8[%c0_15, %c0_16, %c0_17], %22 {strides = array<i32>} : memref<1x256x128xf32, #tpu.memory_space<vmem>>, vector<1x256x128xf32>,
    %23 = vector.extract_strided_slice %14 {offsets = [0, 256], sizes = [256, 128], strides = [1, 1]} : vector<256x384xf32> to vector<256x128xf32>
    %c0_18 = arith.constant 0 : index
    %c0_19 = arith.constant 0 : index
    %c0_20 = arith.constant 0 : index
    %24 = vector.load %arg9[%c0_18, %c0_19, %c0_20] : memref<1x256x128xf32, #tpu.memory_space<vmem>>, vector<1x256x128xf32>
    %25 = vector.shape_cast %24 : vector<1x256x128xf32> to vector<256x128xf32>
    %26 = vector.shape_cast %23 : vector<256x128xf32> to vector<1x256x128xf32>
    tpu.vector_store %arg9[%c0_18, %c0_19, %c0_20], %26 {strides = array<i32>} : memref<1x256x128xf32, #tpu.memory_space<vmem>>, vector<1x256x128xf32>,
    return
  }
  func.func @transform_0(%arg0: i32, %arg1: i32) -> (i32, i32, i32) {
    %c0_i32 = arith.constant 0 : i32
    %c0_i32_0 = arith.constant 0 : i32
    return %arg0, %arg1, %c0_i32 : i32, i32, i32
  }
  func.func @transform_1(%arg0: i32, %arg1: i32) -> (i32, i32, i32) {
    %c0_i32 = arith.constant 0 : i32
    %c0_i32_0 = arith.constant 0 : i32
    %c0_i32_1 = arith.constant 0 : i32
    return %arg0, %c0_i32, %c0_i32_0 : i32, i32, i32
  }
  func.func @transform_2(%arg0: i32, %arg1: i32) -> (i32, i32, i32) {
    %c0_i32 = arith.constant 0 : i32
    %c0_i32_0 = arith.constant 0 : i32
    %c0_i32_1 = arith.constant 0 : i32
    return %arg0, %c0_i32, %c0_i32_0 : i32, i32, i32
  }
  func.func @transform_3(%arg0: i32, %arg1: i32) -> (i32, i32) {
    %c0_i32 = arith.constant 0 : i32
    %c0_i32_0 = arith.constant 0 : i32
    %c0_i32_1 = arith.constant 0 : i32
    return %c0_i32, %c0_i32_0 : i32, i32
  }
  func.func @transform_4(%arg0: i32, %arg1: i32) -> (i32, i32) {
    %c0_i32 = arith.constant 0 : i32
    %c0_i32_0 = arith.constant 0 : i32
    %c0_i32_1 = arith.constant 0 : i32
    return %c0_i32, %c0_i32_0 : i32, i32
  }
  func.func @transform_5(%arg0: i32, %arg1: i32) -> (i32, i32, i32) {
    %c0_i32 = arith.constant 0 : i32
    %c0_i32_0 = arith.constant 0 : i32
    return %arg0, %arg1, %c0_i32 : i32, i32, i32
  }
  func.func @transform_6(%arg0: i32, %arg1: i32) -> (i32, i32, i32) {
    %c0_i32 = arith.constant 0 : i32
    %c0_i32_0 = arith.constant 0 : i32
    return %arg0, %arg1, %c0_i32 : i32, i32, i32
  }
  func.func @transform_7(%arg0: i32, %arg1: i32) -> (i32, i32, i32) {
    %c0_i32 = arith.constant 0 : i32
    %c0_i32_0 = arith.constant 0 : i32
    return %arg0, %arg1, %c0_i32 : i32, i32, i32
  }
}

</mosaic_0001>

<llo_original>
// kernel: tpu_custom_call.1
$region0: #{tpu_custom_call.1}
  #allocation0 [shape = 'u32[]', space=smem, size = 0x4, offset = 0x4, fixed_abs, tag = 'smem constant byte address 0x4 - core index']
  #allocation1 [shape = 'u32[144,128]{1,0:T(1,128)}', space=vmem, size = 0x12000, scoped, tag = 'internal scratch']
  %s0 = inlined_call_operand.hbm [shape: f32[2,256,128], index: 0, kind: input, shape index: {}]
  %s1 = inlined_call_operand.vmem [shape: f32[2,1,128], index: 1, kind: input, shape index: {}]
  %s2 = inlined_call_operand.vmem [shape: f32[2,1,128], index: 2, kind: input, shape index: {}]
  %s3 = inlined_call_operand.hbm [shape: f32[128,384], index: 3, kind: input, shape index: {}]
  %s4 = inlined_call_operand.vmem [shape: f32[1,384], index: 4, kind: input, shape index: {}]
  %s5 = inlined_call_operand.hbm [shape: f32[2,256,128], index: 5, kind: output, shape index: {0}]
  %s6 = inlined_call_operand.hbm [shape: f32[2,256,128], index: 6, kind: output, shape index: {1}]
  %s7 = inlined_call_operand.hbm [shape: f32[2,256,128], index: 7, kind: output, shape index: {2}]
  %8 = xla_tuple %s5, %s6, %s7
  %s9 = sld [smem:[#allocation0]]
  $region77: #{tpu_custom_call.1} parent=0
    _
  %s11 = ssub.s32 1, %s9
  %s12 = scalar_select 0, %s11, %s9
  $region1: #{tpu_custom_call.1} parent=0
    #allocation2 [shape = 'u8[262144]{0}', space=vmem, size = 0x40000, scoped, tag = 'input window, operand 0']
    #allocation3 [shape = 's32[2]{0}', space=sflag, size = 0x8, scoped, tag = 'scoped memory for tpu_custom_call.1']
    #allocation4 [shape = 's32[2]{0}', space=sflag, size = 0x8, scoped, tag = 'scoped memory for tpu_custom_call.1']
    #allocation5 [shape = 'u8[196608]{0}', space=vmem, size = 0x30000, scoped, tag = 'input window, operand 3, single buffered']
    #allocation6 [shape = 's32[1]{0}', space=sflag, size = 0x4, scoped, tag = 'scoped memory for tpu_custom_call.1']
    #allocation7 [shape = 'u8[262144]{0}', space=vmem, size = 0x40000, scoped, tag = 'output window, operand 0']
    #allocation8 [shape = 'u8[262144]{0}', space=vmem, size = 0x40000, scoped, tag = 'output window, operand 1']
    #allocation9 [shape = 's32[2]{0}', space=sflag, size = 0x8, scoped, tag = 'scoped memory for tpu_custom_call.1']
    #allocation10 [shape = 'u8[262144]{0}', space=vmem, size = 0x40000, scoped, tag = 'output window, operand 2']
    %13 = vsyncpa [#allocation3], 0
    %s14 = scalar_lea.sflag [#allocation3], 1
    %15 = vsyncpa %s14, 0
    %16 = vsyncpa [#allocation6], 0
    %17 = vsyncpa [#allocation4], 0
    %s18 = scalar_lea.sflag [#allocation4], 1
    %19 = vsyncpa %s18, 0
    %20 = vsyncpa [#allocation9], 0
    %s21 = scalar_lea.sflag [#allocation9], 1
    %22 = vsyncpa %s21, 0
    loop: start=0, step=1, limit=4
    $region2: #{tpu_custom_call.1} parent=1 // loop_pre_header
      _
    $region3: #{tpu_custom_call.1} parent=1 // loop_header
      %s24 = sphi 0, %s28
      %p25 = scmp.ge.s32.totalorder %s24, 4
      %s31 = sphi 0, %s43
      %s32 = sphi 0, %s39
      %s33 = sphi 0, %s31
      %s34 = sphi 0, %s32
      %s35 = sphi 0, %s33
      %s36 = sphi 0, %s34
      %s48 = sphi 0, %s50
      %s51 = sphi 0, %s48
      %s52 = sphi 0, %s51
      %s68 = sphi 0, %s52
      %s74 = sphi 0, %s76
      %s77 = sphi 0, %s74
      %s78 = sphi 0, %s77
      %s94 = sphi 0, %s78
      %s100 = sphi 0, %s102
      %s103 = sphi 0, %s100
      %s104 = sphi 0, %s103
      %s120 = sphi 0, %s104
      %s124 = sphi 0, %s124
      %s126 = sphi 0, %s124
      %s127 = sphi 0, %s126
      %s141 = sphi 0, %s127
      %s145 = sphi 0, %s145
      %s147 = sphi 0, %s145
      %s148 = sphi 0, %s147
      %s162 = sphi 0, %s148
      %s170 = sphi 0, %s172
      %s173 = sphi 0, %s170
      %s174 = sphi 0, %s173
      %s190 = sphi 0, %s174
      %s198 = sphi 0, %s200
      %s201 = sphi 0, %s198
      %s202 = sphi 0, %s201
      %s218 = sphi 0, %s202
      %s226 = sphi 0, %s228
      %s229 = sphi 0, %s226
      %s230 = sphi 0, %s229
      %s246 = sphi 0, %s230
    $region4: #{tpu_custom_call.1} parent=1 // loop_header_branch
      %27 = sbr.rel (%p25) target = $region8
    $region5: #{tpu_custom_call.1} parent=1 // loop_body
      %s29 = ssub.s32 %s24, 1
      %s30 = ssub.s32 %s24, 2
      %s37 = sadd.s32 1, %s32
      %p38 = scmp.ge.s32.totalorder %s37, 1
      %s39 = scalar_select %p38, 0, %s37
      %s40 = sadd.s32 1, %s31
      %s41 = scalar_select %p38, %s40, %s31
      %p42 = scmp.ge.s32.totalorder %s41, 2
      %s43 = scalar_select %p42, 0, %s41
      %s44 = ssub.s32 %s31, %s43
      %s45 = ssub.s32 %s32, %s39
      %s46 = sor.u32 %s44, %s45
      %p47 = scmp.eq.s32.totalorder %s46, 0
      %s49 = sadd.s32 %s48, 1
      %s50 = scalar_select %p47, %s48, %s49
      %p53 = pneg %p47
      %p54 = scmp.eq.s32.totalorder %s24, 1
      %p55 = por %p53, %p54
      %p56 = scmp.ne.s32.totalorder %s48, %s51
      %p57 = scmp.eq.s32.totalorder %s24, 0
      %p58 = por %p56, %p57
      %p59 = scmp.ne.s32.totalorder %s48, %s51
      %p60 = scmp.eq.s32.totalorder %s29, 1
      %p61 = por %p59, %p60
      %p62 = scmp.ne.s32.totalorder %s51, %s52
      %p63 = scmp.eq.s32.totalorder %s29, 0
      %p64 = por %p62, %p63
      %p65 = scmp.ne.s32.totalorder %s51, %s52
      %p66 = scmp.eq.s32.totalorder %s30, 1
      %p67 = por %p65, %p66
      %p69 = scmp.ne.s32.totalorder %s52, %s68
      %p70 = scmp.eq.s32.totalorder %s30, 0
      %p71 = por %p69, %p70
      %s72 = ssub.s32 %s31, %s43
      %p73 = scmp.eq.s32.totalorder %s72, 0
      %s75 = sadd.s32 %s74, 1
      %s76 = scalar_select %p73, %s74, %s75
      %p79 = pneg %p73
      %p80 = scmp.eq.s32.totalorder %s24, 1
      %p81 = por %p79, %p80
      %p82 = scmp.ne.s32.totalorder %s74, %s77
      %p83 = scmp.eq.s32.totalorder %s24, 0
      %p84 = por %p82, %p83
      %p85 = scmp.ne.s32.totalorder %s74, %s77
      %p86 = scmp.eq.s32.totalorder %s29, 1
      %p87 = por %p85, %p86
      %p88 = scmp.ne.s32.totalorder %s77, %s78
      %p89 = scmp.eq.s32.totalorder %s29, 0
      %p90 = por %p88, %p89
      %p91 = scmp.ne.s32.totalorder %s77, %s78
      %p92 = scmp.eq.s32.totalorder %s30, 1
      %p93 = por %p91, %p92
      %p95 = scmp.ne.s32.totalorder %s78, %s94
      %p96 = scmp.eq.s32.totalorder %s30, 0
      %p97 = por %p95, %p96
      %s98 = ssub.s32 %s31, %s43
      %p99 = scmp.eq.s32.totalorder %s98, 0
      %s101 = sadd.s32 %s100, 1
      %s102 = scalar_select %p99, %s100, %s101
      %p105 = pneg %p99
      %p106 = scmp.eq.s32.totalorder %s24, 1
      %p107 = por %p105, %p106
      %p108 = scmp.ne.s32.totalorder %s100, %s103
      %p109 = scmp.eq.s32.totalorder %s24, 0
      %p110 = por %p108, %p109
      %p111 = scmp.ne.s32.totalorder %s100, %s103
      %p112 = scmp.eq.s32.totalorder %s29, 1
      %p113 = por %p111, %p112
      %p114 = scmp.ne.s32.totalorder %s103, %s104
      %p115 = scmp.eq.s32.totalorder %s29, 0
      %p116 = por %p114, %p115
      %p117 = scmp.ne.s32.totalorder %s103, %s104
      %p118 = scmp.eq.s32.totalorder %s30, 1
      %p119 = por %p117, %p118
      %p121 = scmp.ne.s32.totalorder %s104, %s120
      %p122 = scmp.eq.s32.totalorder %s30, 0
      %p123 = por %p121, %p122
      %s125 = sadd.s32 %s124, 1
      %p128 = scmp.eq.s32.totalorder %s24, 1
      %p129 = scmp.ne.s32.totalorder %s124, %s126
      %p130 = scmp.eq.s32.totalorder %s24, 0
      %p131 = por %p129, %p130
      %p132 = scmp.ne.s32.totalorder %s124, %s126
      %p133 = scmp.eq.s32.totalorder %s29, 1
      %p134 = por %p132, %p133
      %p135 = scmp.ne.s32.totalorder %s126, %s127
      %p136 = scmp.eq.s32.totalorder %s29, 0
      %p137 = por %p135, %p136
      %p138 = scmp.ne.s32.totalorder %s126, %s127
      %p139 = scmp.eq.s32.totalorder %s30, 1
      %p140 = por %p138, %p139
      %p142 = scmp.ne.s32.totalorder %s127, %s141
      %p143 = scmp.eq.s32.totalorder %s30, 0
      %p144 = por %p142, %p143
      %s146 = sadd.s32 %s145, 1
      %p149 = scmp.eq.s32.totalorder %s24, 1
      %p150 = scmp.ne.s32.totalorder %s145, %s147
      %p151 = scmp.eq.s32.totalorder %s24, 0
      %p152 = por %p150, %p151
      %p153 = scmp.ne.s32.totalorder %s145, %s147
      %p154 = scmp.eq.s32.totalorder %s29, 1
      %p155 = por %p153, %p154
      %p156 = scmp.ne.s32.totalorder %s147, %s148
      %p157 = scmp.eq.s32.totalorder %s29, 0
      %p158 = por %p156, %p157
      %p159 = scmp.ne.s32.totalorder %s147, %s148
      %p160 = scmp.eq.s32.totalorder %s30, 1
      %p161 = por %p159, %p160
      %p163 = scmp.ne.s32.totalorder %s148, %s162
      %p164 = scmp.eq.s32.totalorder %s30, 0
      %p165 = por %p163, %p164
      %s166 = ssub.s32 %s31, %s43
      %s167 = ssub.s32 %s32, %s39
      %s168 = sor.u32 %s166, %s167
      %p169 = scmp.eq.s32.totalorder %s168, 0
      %s171 = sadd.s32 %s170, 1
      %s172 = scalar_select %p169, %s170, %s171
      %p175 = pneg %p169
      %p176 = scmp.eq.s32.totalorder %s24, 1
      %p177 = por %p175, %p176
      %p178 = scmp.ne.s32.totalorder %s170, %s173
      %p179 = scmp.eq.s32.totalorder %s24, 0
      %p180 = por %p178, %p179
      %p181 = scmp.ne.s32.totalorder %s170, %s173
      %p182 = scmp.eq.s32.totalorder %s29, 1
      %p183 = por %p181, %p182
      %p184 = scmp.ne.s32.totalorder %s173, %s174
      %p185 = scmp.eq.s32.totalorder %s29, 0
      %p186 = por %p184, %p185
      %p187 = scmp.ne.s32.totalorder %s173, %s174
      %p188 = scmp.eq.s32.totalorder %s30, 1
      %p189 = por %p187, %p188
      %p191 = scmp.ne.s32.totalorder %s174, %s190
      %p192 = scmp.eq.s32.totalorder %s30, 0
      %p193 = por %p191, %p192
      %s194 = ssub.s32 %s31, %s43
      %s195 = ssub.s32 %s32, %s39
      %s196 = sor.u32 %s194, %s195
      %p197 = scmp.eq.s32.totalorder %s196, 0
      %s199 = sadd.s32 %s198, 1
      %s200 = scalar_select %p197, %s198, %s199
      %p203 = pneg %p197
      %p204 = scmp.eq.s32.totalorder %s24, 1
      %p205 = por %p203, %p204
      %p206 = scmp.ne.s32.totalorder %s198, %s201
      %p207 = scmp.eq.s32.totalorder %s24, 0
      %p208 = por %p206, %p207
      %p209 = scmp.ne.s32.totalorder %s198, %s201
      %p210 = scmp.eq.s32.totalorder %s29, 1
      %p211 = por %p209, %p210
      %p212 = scmp.ne.s32.totalorder %s201, %s202
      %p213 = scmp.eq.s32.totalorder %s29, 0
      %p214 = por %p212, %p213
      %p215 = scmp.ne.s32.totalorder %s201, %s202
      %p216 = scmp.eq.s32.totalorder %s30, 1
      %p217 = por %p215, %p216
      %p219 = scmp.ne.s32.totalorder %s202, %s218
      %p220 = scmp.eq.s32.totalorder %s30, 0
      %p221 = por %p219, %p220
      %s222 = ssub.s32 %s31, %s43
      %s223 = ssub.s32 %s32, %s39
      %s224 = sor.u32 %s222, %s223
      %p225 = scmp.eq.s32.totalorder %s224, 0
      %s227 = sadd.s32 %s226, 1
      %s228 = scalar_select %p225, %s226, %s227
      %p231 = pneg %p225
      %p232 = scmp.eq.s32.totalorder %s24, 1
      %p233 = por %p231, %p232
      %p234 = scmp.ne.s32.totalorder %s226, %s229
      %p235 = scmp.eq.s32.totalorder %s24, 0
      %p236 = por %p234, %p235
      %p237 = scmp.ne.s32.totalorder %s226, %s229
      %p238 = scmp.eq.s32.totalorder %s29, 1
      %p239 = por %p237, %p238
      %p240 = scmp.ne.s32.totalorder %s229, %s230
      %p241 = scmp.eq.s32.totalorder %s29, 0
      %p242 = por %p240, %p241
      %p243 = scmp.ne.s32.totalorder %s229, %s230
      %p244 = scmp.eq.s32.totalorder %s30, 1
      %p245 = por %p243, %p244
      %p247 = scmp.ne.s32.totalorder %s230, %s246
      %p248 = scmp.eq.s32.totalorder %s30, 0
      %p249 = por %p247, %p248
      %p250 = scmp.le.s32.totalorder 1, %s24
      %p251 = scmp.lt.s32.totalorder %s24, 3
      %p252 = pnand %p250, %p251
      %p253 = pneg %p252
      // Predicated region
      $region9: #{tpu_custom_call.1} parent=5 // pred_check
        _
      $region10: #{tpu_custom_call.1} parent=5 // pred_check_branch
        %255 = sbr.rel (%p252) target = $region12
      $region11: #{tpu_custom_call.1} parent=5 // pred_region
        %s256 = ssub.s32 %s24, 1
        // Predicated region
        $region13: #{tpu_custom_call.1} parent=11 // pred_check
          %p257 = pneg %p137
        $region14: #{tpu_custom_call.1} parent=11 // pred_check_branch
          %259 = sbr.rel (%p257) target = $region16
        $region15: #{tpu_custom_call.1} parent=11 // pred_region
          %s261 = ssub.s32 6144, 6144
          %262 = vsyncadd [#allocation6], %s261
          %s263 = sshll.u32 [#allocation5], 4
          %s264 = int_to_ptr.vmem [resolvable:$true] %s263
          %269 = dma.hbm_to_vmem [thread:$0]  %s3, 6144, %s264, [#allocation6], 384, 384, 24
        $region16: #{tpu_custom_call.1} parent=11 // pred_fallthru
          _
        // Predicated region
        $region17: #{tpu_custom_call.1} parent=11 // pred_check
          %p270 = pneg %p158
        $region18: #{tpu_custom_call.1} parent=11 // pred_check_branch
          %272 = sbr.rel (%p270) target = $region20
        $region19: #{tpu_custom_call.1} parent=11 // pred_region
          _
        $region20: #{tpu_custom_call.1} parent=11 // pred_fallthru
          _
      $region12: #{tpu_custom_call.1} parent=5 // pred_fallthru
        _
      %p273 = scmp.lt.s32.totalorder %s24, 2
      // Predicated region
      $region21: #{tpu_custom_call.1} parent=5 // pred_check
        %p274 = pneg %p273
      $region22: #{tpu_custom_call.1} parent=5 // pred_check_branch
        %276 = sbr.rel (%p274) target = $region24
      $region23: #{tpu_custom_call.1} parent=5 // pred_region
        // Predicated region
        $region25: #{tpu_custom_call.1} parent=23 // pred_check
          %p277 = pneg %p58
        $region26: #{tpu_custom_call.1} parent=23 // pred_check_branch
          %279 = sbr.rel (%p277) target = $region28
        $region27: #{tpu_custom_call.1} parent=23 // pred_region
          %s280 = sand.u32 %s48, 1
          %s281 = scalar_lea.sflag [#allocation3], %s280
          %s282 = sand.u32 %s48, 1
          %s283 = smul.addr %s282, 256
          %s284 = scalar_lea.vmem [#allocation2], %s283
          %s285 = smul.u32 32, %s32
          %s287 = ssub.s32 4096, 4096
          %288 = vsyncadd %s281, %s287
          %s289 = smul.addr %s31, 32
          %s290 = sadd.s32 %s285, %s289
          %s291 = smul.addr %s290, 128
          %s292 = scalar_lea.hbm %s0, %s291
          %s293 = sshll.u32 %s284, 4
          %s294 = int_to_ptr.vmem [resolvable:$true] %s293
          %299 = dma.hbm_to_vmem [thread:$0]  %s292, 4096, %s294, %s281, 128, 128, 8
        $region28: #{tpu_custom_call.1} parent=23 // pred_fallthru
          _
        // Predicated region
        $region29: #{tpu_custom_call.1} parent=23 // pred_check
          %p300 = pneg %p84
        $region30: #{tpu_custom_call.1} parent=23 // pred_check_branch
          %302 = sbr.rel (%p300) target = $region32
        $region31: #{tpu_custom_call.1} parent=23 // pred_region
          %p303 = scmp.lt.s32.totalorder %s31, 1
          %s304 = scalar_select %p303, %s31, 1
          %s305 = scalar_lea.vmem %s1, %s304
        $region32: #{tpu_custom_call.1} parent=23 // pred_fallthru
          _
        // Predicated region
        $region33: #{tpu_custom_call.1} parent=23 // pred_check
          %p306 = pneg %p110
        $region34: #{tpu_custom_call.1} parent=23 // pred_check_branch
          %308 = sbr.rel (%p306) target = $region36
        $region35: #{tpu_custom_call.1} parent=23 // pred_region
          %p309 = scmp.lt.s32.totalorder %s31, 1
          %s310 = scalar_select %p309, %s31, 1
          %s311 = scalar_lea.vmem %s2, %s310
        $region36: #{tpu_custom_call.1} parent=23 // pred_fallthru
          _
      $region24: #{tpu_custom_call.1} parent=5 // pred_fallthru
        _
      %p312 = scmp.le.s32.totalorder 1, %s24
      %p313 = scmp.lt.s32.totalorder %s24, 3
      %p314 = pnand %p312, %p313
      %p315 = pneg %p314
      // Predicated region
      $region37: #{tpu_custom_call.1} parent=5 // pred_check
        _
      $region38: #{tpu_custom_call.1} parent=5 // pred_check_branch
        %317 = sbr.rel (%p314) target = $region40
      $region39: #{tpu_custom_call.1} parent=5 // pred_region
        %s318 = ssub.s32 %s24, 1
        %s319 = sand.u32 %s51, 1
        %s320 = scalar_lea.sflag [#allocation3], %s319
        %s321 = sand.u32 %s51, 1
        %s322 = smul.addr %s321, 256
        %s323 = scalar_lea.vmem [#allocation2], %s322
        // Predicated region
        $region41: #{tpu_custom_call.1} parent=39 // pred_check
          %p324 = pneg %p64
        $region42: #{tpu_custom_call.1} parent=39 // pred_check_branch
          %326 = sbr.rel (%p324) target = $region44
        $region43: #{tpu_custom_call.1} parent=39 // pred_region
          %327 = dma.done %s320, 4096
        $region44: #{tpu_custom_call.1} parent=39 // pred_fallthru
          _
        // Predicated region
        $region45: #{tpu_custom_call.1} parent=39 // pred_check
          %p328 = pneg %p137
        $region46: #{tpu_custom_call.1} parent=39 // pred_check_branch
          %330 = sbr.rel (%p328) target = $region48
        $region47: #{tpu_custom_call.1} parent=39 // pred_region
          %331 = dma.done [#allocation6], 6144
        $region48: #{tpu_custom_call.1} parent=39 // pred_fallthru
          _
        %s332 = sand.u32 %s51, 1
        %s333 = scalar_lea.sflag [#allocation3], %s332
        %s334 = sand.u32 %s51, 1
        %s335 = smul.addr %s334, 256
        %s336 = scalar_lea.vmem [#allocation2], %s335
        %p337 = pneg %p64
        %p338 = pneg %p61
        %p339 = scmp.lt.s32.totalorder %s33, 1
        %s340 = scalar_select %p339, %s33, 1
        %s341 = scalar_lea.vmem %s1, %s340
        %p342 = pneg %p90
        %p343 = pneg %p87
        %p344 = scmp.lt.s32.totalorder %s33, 1
        %s345 = scalar_select %p344, %s33, 1
        %s346 = scalar_lea.vmem %s2, %s345
        %p347 = pneg %p116
        %p348 = pneg %p113
        %p349 = pneg %p137
        %p350 = pneg %p134
        %p351 = pneg %p158
        %p352 = pneg %p155
        %p353 = pneg %p186
        %p354 = pneg %p183
        %s355 = sand.u32 %s173, 1
        %s356 = scalar_lea.sflag [#allocation4], %s355
        %s357 = sand.u32 %s173, 1
        %s358 = smul.addr %s357, 256
        %s359 = scalar_lea.vmem [#allocation7], %s358
        %p360 = pneg %p214
        %p361 = pneg %p211
        %s362 = sand.u32 %s29, 1
        %s363 = scalar_lea.sflag [#allocation9], %s362
        %s364 = sand.u32 %s201, 1
        %s365 = smul.addr %s364, 256
        %s366 = scalar_lea.vmem [#allocation8], %s365
        %p367 = pneg %p242
        %p368 = pneg %p239
        %s369 = sand.u32 %s29, 1
        %s370 = scalar_lea.sflag [#allocation9], %s369
        %s371 = sand.u32 %s229, 1
        %s372 = smul.addr %s371, 256
        %s373 = scalar_lea.vmem [#allocation10], %s372
        %s374 = smul.u32 32, %s34
        %p375 = scmp.lt.s32.totalorder %s33, 1
        %s376 = scalar_select %p375, %s33, 1
        %s377 = scalar_lea.vmem %s1, %s376
        %p378 = scmp.lt.s32.totalorder %s33, 1
        %s379 = scalar_select %p378, %s33, 1
        %s380 = scalar_lea.vmem %s2, %s379
        %s381 = smul.u32 32, %s34
        %s382 = smul.u32 32, %s34
        %s383 = smul.u32 32, %s34
        %v384 = vld [vmem:[%s323] sm:$0xff]
        %v385 = vld [vmem:[%s323 + $0x8] sm:$0xff]
        %v386 = vld [vmem:[%s323 + $0x10] sm:$0xff]
        %v387 = vld [vmem:[%s323 + $0x18] sm:$0xff]
        %v388 = vld [vmem:[%s323 + $0x20] sm:$0xff]
        %v389 = vld [vmem:[%s323 + $0x28] sm:$0xff]
        %v390 = vld [vmem:[%s323 + $0x30] sm:$0xff]
        %v391 = vld [vmem:[%s323 + $0x38] sm:$0xff]
        %v392 = vld [vmem:[%s323 + $0x40] sm:$0xff]
        %v393 = vld [vmem:[%s323 + $0x48] sm:$0xff]
        %v394 = vld [vmem:[%s323 + $0x50] sm:$0xff]
        %v395 = vld [vmem:[%s323 + $0x58] sm:$0xff]
        %v396 = vld [vmem:[%s323 + $0x60] sm:$0xff]
        %v397 = vld [vmem:[%s323 + $0x68] sm:$0xff]
        %v398 = vld [vmem:[%s323 + $0x70] sm:$0xff]
        %v399 = vld [vmem:[%s323 + $0x78] sm:$0xff]
        %v400 = vld [vmem:[%s323 + $0x80] sm:$0xff]
        %v401 = vld [vmem:[%s323 + $0x88] sm:$0xff]
        %v402 = vld [vmem:[%s323 + $0x90] sm:$0xff]
        %v403 = vld [vmem:[%s323 + $0x98] sm:$0xff]
        %v404 = vld [vmem:[%s323 + $0xa0] sm:$0xff]
        %v405 = vld [vmem:[%s323 + $0xa8] sm:$0xff]
        %v406 = vld [vmem:[%s323 + $0xb0] sm:$0xff]
        %v407 = vld [vmem:[%s323 + $0xb8] sm:$0xff]
        %v408 = vld [vmem:[%s323 + $0xc0] sm:$0xff]
        %v409 = vld [vmem:[%s323 + $0xc8] sm:$0xff]
        %v410 = vld [vmem:[%s323 + $0xd0] sm:$0xff]
        %v411 = vld [vmem:[%s323 + $0xd8] sm:$0xff]
        %v412 = vld [vmem:[%s323 + $0xe0] sm:$0xff]
        %v413 = vld [vmem:[%s323 + $0xe8] sm:$0xff]
        %v414 = vld [vmem:[%s323 + $0xf0] sm:$0xff]
        %v415 = vld [vmem:[%s323 + $0xf8] sm:$0xff]
        %v416 = vld [vmem:[%s377] sm:$0x1]
        %v418 = vlaneseq
        %v419 = vshrl.u32 %v418, 7
        %v420 = vsub.s32 0, %v419
        %v421 = vrot.slane %v416, %v420
        %v423 = vmul.f32 %v384, %v421
        %v424 = vmul.f32 %v385, %v421
        %v425 = vmul.f32 %v386, %v421
        %v426 = vmul.f32 %v387, %v421
        %v427 = vmul.f32 %v388, %v421
        %v428 = vmul.f32 %v389, %v421
        %v429 = vmul.f32 %v390, %v421
        %v430 = vmul.f32 %v391, %v421
        %v431 = vmul.f32 %v392, %v421
        %v432 = vmul.f32 %v393, %v421
        %v433 = vmul.f32 %v394, %v421
        %v434 = vmul.f32 %v395, %v421
        %v435 = vmul.f32 %v396, %v421
        %v436 = vmul.f32 %v397, %v421
        %v437 = vmul.f32 %v398, %v421
        %v438 = vmul.f32 %v399, %v421
        %v439 = vmul.f32 %v400, %v421
        %v440 = vmul.f32 %v401, %v421
        %v441 = vmul.f32 %v402, %v421
        %v442 = vmul.f32 %v403, %v421
        %v443 = vmul.f32 %v404, %v421
        %v444 = vmul.f32 %v405, %v421
        %v445 = vmul.f32 %v406, %v421
        %v446 = vmul.f32 %v407, %v421
        %v447 = vmul.f32 %v408, %v421
        %v448 = vmul.f32 %v409, %v421
        %v449 = vmul.f32 %v410, %v421
        %v450 = vmul.f32 %v411, %v421
        %v451 = vmul.f32 %v412, %v421
        %v452 = vmul.f32 %v413, %v421
        %v453 = vmul.f32 %v414, %v421
        %v454 = vmul.f32 %v415, %v421
        %v455 = vld [vmem:[%s380] sm:$0x1]
        %v457 = vlaneseq
        %v458 = vshrl.u32 %v457, 7
        %v459 = vsub.s32 0, %v458
        %v460 = vrot.slane %v455, %v459
        %v462 = vadd.f32 %v423, %v460
        %v463 = vadd.f32 %v424, %v460
        %v464 = vadd.f32 %v425, %v460
        %v465 = vadd.f32 %v426, %v460
        %v466 = vadd.f32 %v427, %v460
        %v467 = vadd.f32 %v428, %v460
        %v468 = vadd.f32 %v429, %v460
        %v469 = vadd.f32 %v430, %v460
        %v470 = vadd.f32 %v431, %v460
        %v471 = vadd.f32 %v432, %v460
        %v472 = vadd.f32 %v433, %v460
        %v473 = vadd.f32 %v434, %v460
        %v474 = vadd.f32 %v435, %v460
        %v475 = vadd.f32 %v436, %v460
        %v476 = vadd.f32 %v437, %v460
        %v477 = vadd.f32 %v438, %v460
        %v478 = vadd.f32 %v439, %v460
        %v479 = vadd.f32 %v440, %v460
        %v480 = vadd.f32 %v441, %v460
        %v481 = vadd.f32 %v442, %v460
        %v482 = vadd.f32 %v443, %v460
        %v483 = vadd.f32 %v444, %v460
        %v484 = vadd.f32 %v445, %v460
        %v485 = vadd.f32 %v446, %v460
        %v486 = vadd.f32 %v447, %v460
        %v487 = vadd.f32 %v448, %v460
        %v488 = vadd.f32 %v449, %v460
        %v489 = vadd.f32 %v450, %v460
        %v490 = vadd.f32 %v451, %v460
        %v491 = vadd.f32 %v452, %v460
        %v492 = vadd.f32 %v453, %v460
        %v493 = vadd.f32 %v454, %v460
        %v494 = vld [vmem:[#allocation5] sm:$0xff]
        %v495 = vld [vmem:[#allocation5 + $0x8] sm:$0xff]
        %v496 = vld [vmem:[#allocation5 + $0x10] sm:$0xff]
        %v497 = vld [vmem:[#allocation5 + $0x18] sm:$0xff]
        %v498 = vld [vmem:[#allocation5 + $0x20] sm:$0xff]
        %v499 = vld [vmem:[#allocation5 + $0x28] sm:$0xff]
        %v500 = vld [vmem:[#allocation5 + $0x30] sm:$0xff]
        %v501 = vld [vmem:[#allocation5 + $0x38] sm:$0xff]
        %v502 = vld [vmem:[#allocation5 + $0x40] sm:$0xff]
        %v503 = vld [vmem:[#allocation5 + $0x48] sm:$0xff]
        %v504 = vld [vmem:[#allocation5 + $0x50] sm:$0xff]
        %v505 = vld [vmem:[#allocation5 + $0x58] sm:$0xff]
        %v506 = vld [vmem:[#allocation5 + $0x60] sm:$0xff]
        %v507 = vld [vmem:[#allocation5 + $0x68] sm:$0xff]
        %v508 = vld [vmem:[#allocation5 + $0x70] sm:$0xff]
        %v509 = vld [vmem:[#allocation5 + $0x78] sm:$0xff]
        %v510 = vld [vmem:[#allocation5 + $0x80] sm:$0xff]
        %v511 = vld [vmem:[#allocation5 + $0x88] sm:$0xff]
        %v512 = vld [vmem:[#allocation5 + $0x90] sm:$0xff]
        %v513 = vld [vmem:[#allocation5 + $0x98] sm:$0xff]
        %v514 = vld [vmem:[#allocation5 + $0xa0] sm:$0xff]
        %v515 = vld [vmem:[#allocation5 + $0xa8] sm:$0xff]
        %v516 = vld [vmem:[#allocation5 + $0xb0] sm:$0xff]
        %v517 = vld [vmem:[#allocation5 + $0xb8] sm:$0xff]
        %v518 = vld [vmem:[#allocation5 + $0xc0] sm:$0xff]
        %v519 = vld [vmem:[#allocation5 + $0xc8] sm:$0xff]
        %v520 = vld [vmem:[#allocation5 + $0xd0] sm:$0xff]
        %v521 = vld [vmem:[#allocation5 + $0xd8] sm:$0xff]
        %v522 = vld [vmem:[#allocation5 + $0xe0] sm:$0xff]
        %v523 = vld [vmem:[#allocation5 + $0xe8] sm:$0xff]
        %v524 = vld [vmem:[#allocation5 + $0xf0] sm:$0xff]
        %v525 = vld [vmem:[#allocation5 + $0xf8] sm:$0xff]
        %v526 = vld [vmem:[#allocation5 + $0x100] sm:$0xff]
        %v527 = vld [vmem:[#allocation5 + $0x108] sm:$0xff]
        %v528 = vld [vmem:[#allocation5 + $0x110] sm:$0xff]
        %v529 = vld [vmem:[#allocation5 + $0x118] sm:$0xff]
        %v530 = vld [vmem:[#allocation5 + $0x120] sm:$0xff]
        %v531 = vld [vmem:[#allocation5 + $0x128] sm:$0xff]
        %v532 = vld [vmem:[#allocation5 + $0x130] sm:$0xff]
        %v533 = vld [vmem:[#allocation5 + $0x138] sm:$0xff]
        %v534 = vld [vmem:[#allocation5 + $0x140] sm:$0xff]
        %v535 = vld [vmem:[#allocation5 + $0x148] sm:$0xff]
        %v536 = vld [vmem:[#allocation5 + $0x150] sm:$0xff]
        %v537 = vld [vmem:[#allocation5 + $0x158] sm:$0xff]
        %v538 = vld [vmem:[#allocation5 + $0x160] sm:$0xff]
        %v539 = vld [vmem:[#allocation5 + $0x168] sm:$0xff]
        %v540 = vld [vmem:[#allocation5 + $0x170] sm:$0xff]
        %v541 = vld [vmem:[#allocation5 + $0x178] sm:$0xff]
        %v542 = vld [vmem:[%s4] sm:$0x7]
        %v544 = vlaneseq
        %v545 = vshrl.u32 %v544, 7
        %v546 = vsub.s32 0, %v545
        %v547 = vrot.slane %v542, %v546
        %v548 = vlaneseq
        %v549 = vshrl.u32 %v548, 7
        %v550 = vsub.s32 1, %v549
        %v551 = vrot.slane %v542, %v550
        %v552 = vlaneseq
        %v553 = vshrl.u32 %v552, 7
        %v554 = vsub.s32 2, %v553
        %v555 = vrot.slane %v542, %v554
        %559 = vmatprep.subr.mxu0 %v495
        %560 = vmatpush1.msra.mxu0 %v494
        %561 = vmatprep.subr.mxu0 %v498
        %562 = vmatpush1.msra.mxu0 %v497
        %563 = vmatprep.subr.mxu0 %v501
        %564 = vmatpush1.msra.mxu0 %v500
        %565 = vmatprep.subr.mxu0 %v504
        %566 = vmatpush1.msra.mxu0 %v503
        %567 = vmatprep.subr.mxu0 %v507
        %568 = vmatpush1.msra.mxu0 %v506
        %569 = vmatprep.subr.mxu0 %v510
        %570 = vmatpush1.msra.mxu0 %v509
        %571 = vmatprep.subr.mxu0 %v513
        %572 = vmatpush1.msra.mxu0 %v512
        %573 = vmatprep.subr.mxu0 %v516
        %574 = vmatpush1.msra.mxu0 %v515
        %575 = vmatprep.subr.mxu0 %v519
        %576 = vmatpush1.msra.mxu0 %v518
        %577 = vmatprep.subr.mxu0 %v522
        %578 = vmatpush1.msra.mxu0 %v521
        %579 = vmatprep.subr.mxu0 %v525
        %580 = vmatpush1.msra.mxu0 %v524
        %581 = vmatprep.subr.mxu0 %v528
        %582 = vmatpush1.msra.mxu0 %v527
        %583 = vmatprep.subr.mxu0 %v531
        %584 = vmatpush1.msra.mxu0 %v530
        %585 = vmatprep.subr.mxu0 %v534
        %586 = vmatpush1.msra.mxu0 %v533
        %587 = vmatprep.subr.mxu0 %v537
        %588 = vmatpush1.msra.mxu0 %v536
        %589 = vmatprep.subr.mxu0 %v540
        %590 = vmatpush1.msra.mxu0 %v539
        %591 = vmatprep.subr.mxu0 0.0
        %592 = vmatpush1.msra.mxu0 0.0
        %593 = vmatprep.subr.mxu0 0.0
        %594 = vmatpush1.msra.mxu0 0.0
        %595 = vmatprep.subr.mxu0 0.0
        %596 = vmatpush1.msra.mxu0 0.0
        %597 = vmatprep.subr.mxu0 0.0
        %598 = vmatpush1.msra.mxu0 0.0
        %599 = vmatprep.subr.mxu0 0.0
        %600 = vmatpush1.msra.mxu0 0.0
        %601 = vmatprep.subr.mxu0 0.0
        %602 = vmatpush1.msra.mxu0 0.0
        %603 = vmatprep.subr.mxu0 0.0
        %604 = vmatpush1.msra.mxu0 0.0
        %605 = vmatprep.subr.mxu0 0.0
        %606 = vmatpush1.msra.mxu0 0.0
        %607 = vmatprep.subr.mxu0 0.0
        %608 = vmatpush1.msra.mxu0 0.0
        %609 = vmatprep.subr.mxu0 0.0
        %610 = vmatpush1.msra.mxu0 0.0
        %611 = vmatprep.subr.mxu0 0.0
        %612 = vmatpush1.msra.mxu0 0.0
        %613 = vmatprep.subr.mxu0 0.0
        %614 = vmatpush1.msra.mxu0 0.0
        %615 = vmatprep.subr.mxu0 0.0
        %616 = vmatpush1.msra.mxu0 0.0
        %617 = vmatprep.subr.mxu0 0.0
        %618 = vmatpush1.msra.mxu0 0.0
        %619 = vmatprep.subr.mxu0 0.0
        %620 = vmatpush1.msra.mxu0 0.0
        %621 = vmatprep.subr.mxu0 0.0
        %622 = vmatpush1.msra.mxu0 0.0
        %623 = vmatprep.mubr.f32.mxu0 0.0
        %624 = vmatmul.mubr.f32.gmra.mrb[0].mxu0 %v462
        %v625 = vpop.f32.mrb[0].mxu0
        %v626 = vadd.f32 %v547, %v625
        %v627 = vpop.f32.mrb[0].mxu0
        %v628 = vadd.f32 %v551, %v627
        %629 = vmatprep.mubr.f32.mxu0 0.0
        %630 = vmatmul.mubr.f32.gmra.mrb[0].mxu0 %v463
        %v631 = vpop.f32.mrb[0].mxu0
        %v632 = vadd.f32 %v547, %v631
        %v633 = vpop.f32.mrb[0].mxu0
        %v634 = vadd.f32 %v551, %v633
        %635 = vmatprep.mubr.f32.mxu0 0.0
        %636 = vmatmul.mubr.f32.gmra.mrb[0].mxu0 %v464
        %v637 = vpop.f32.mrb[0].mxu0
        %v638 = vadd.f32 %v547, %v637
        %v639 = vpop.f32.mrb[0].mxu0
        %v640 = vadd.f32 %v551, %v639
        %641 = vmatprep.mubr.f32.mxu0 0.0
        %642 = vmatmul.mubr.f32.gmra.mrb[0].mxu0 %v465
        %v643 = vpop.f32.mrb[0].mxu0
        %v644 = vadd.f32 %v547, %v643
        %v645 = vpop.f32.mrb[0].mxu0
        %v646 = vadd.f32 %v551, %v645
        %647 = vmatprep.mubr.f32.mxu0 0.0
        %648 = vmatmul.mubr.f32.gmra.mrb[0].mxu0 %v466
        %v649 = vpop.f32.mrb[0].mxu0
        %v650 = vadd.f32 %v547, %v649
        %v651 = vpop.f32.mrb[0].mxu0
        %v652 = vadd.f32 %v551, %v651
        %653 = vmatprep.mubr.f32.mxu0 0.0
        %654 = vmatmul.mubr.f32.gmra.mrb[0].mxu0 %v467
        %v655 = vpop.f32.mrb[0].mxu0
        %v656 = vadd.f32 %v547, %v655
        %v657 = vpop.f32.mrb[0].mxu0
        %v658 = vadd.f32 %v551, %v657
        %659 = vmatprep.mubr.f32.mxu0 0.0
        %660 = vmatmul.mubr.f32.gmra.mrb[0].mxu0 %v468
        %v661 = vpop.f32.mrb[0].mxu0
        %v662 = vadd.f32 %v547, %v661
        %v663 = vpop.f32.mrb[0].mxu0
        %v664 = vadd.f32 %v551, %v663
        %665 = vmatprep.mubr.f32.mxu0 0.0
        %666 = vmatmul.mubr.f32.gmra.mrb[0].mxu0 %v469
        %v667 = vpop.f32.mrb[0].mxu0
        %v668 = vadd.f32 %v547, %v667
        %v669 = vpop.f32.mrb[0].mxu0
        %v670 = vadd.f32 %v551, %v669
        %671 = vmatprep.mubr.f32.mxu0 0.0
        %672 = vmatmul.mubr.f32.gmra.mrb[0].mxu0 %v470
        %v673 = vpop.f32.mrb[0].mxu0
        %v674 = vadd.f32 %v547, %v673
        %v675 = vpop.f32.mrb[0].mxu0
        %v676 = vadd.f32 %v551, %v675
        %677 = vmatprep.mubr.f32.mxu0 0.0
        %678 = vmatmul.mubr.f32.gmra.mrb[0].mxu0 %v471
        %v679 = vpop.f32.mrb[0].mxu0
        %v680 = vadd.f32 %v547, %v679
        %v681 = vpop.f32.mrb[0].mxu0
        %v682 = vadd.f32 %v551, %v681
        %683 = vmatprep.mubr.f32.mxu0 0.0
        %684 = vmatmul.mubr.f32.gmra.mrb[0].mxu0 %v472
        %v685 = vpop.f32.mrb[0].mxu0
        %v686 = vadd.f32 %v547, %v685
        %v687 = vpop.f32.mrb[0].mxu0
        %v688 = vadd.f32 %v551, %v687
        %689 = vmatprep.mubr.f32.mxu0 0.0
        %690 = vmatmul.mubr.f32.gmra.mrb[0].mxu0 %v473
        %v691 = vpop.f32.mrb[0].mxu0
        %v692 = vadd.f32 %v547, %v691
        %v693 = vpop.f32.mrb[0].mxu0
        %v694 = vadd.f32 %v551, %v693
        %695 = vmatprep.mubr.f32.mxu0 0.0
        %696 = vmatmul.mubr.f32.gmra.mrb[0].mxu0 %v474
        %v697 = vpop.f32.mrb[0].mxu0
        %v698 = vadd.f32 %v547, %v697
        %v699 = vpop.f32.mrb[0].mxu0
        %v700 = vadd.f32 %v551, %v699
        %701 = vmatprep.mubr.f32.mxu0 0.0
        %702 = vmatmul.mubr.f32.gmra.mrb[0].mxu0 %v475
        %v703 = vpop.f32.mrb[0].mxu0
        %v704 = vadd.f32 %v547, %v703
        %v705 = vpop.f32.mrb[0].mxu0
        %v706 = vadd.f32 %v551, %v705
        %707 = vmatprep.mubr.f32.mxu0 0.0
        %708 = vmatmul.mubr.f32.gmra.mrb[0].mxu0 %v476
        %v709 = vpop.f32.mrb[0].mxu0
        %v710 = vadd.f32 %v547, %v709
        %v711 = vpop.f32.mrb[0].mxu0
        %v712 = vadd.f32 %v551, %v711
        %713 = vmatprep.mubr.f32.mxu0 0.0
        %714 = vmatmul.mubr.f32.gmra.mrb[0].mxu0 %v477
        %v715 = vpop.f32.mrb[0].mxu0
        %v716 = vadd.f32 %v547, %v715
        %v717 = vpop.f32.mrb[0].mxu0
        %v718 = vadd.f32 %v551, %v717
        %719 = vmatprep.mubr.f32.mxu0 0.0
        %720 = vmatmul.mubr.f32.gmra.mrb[0].mxu0 %v478
        %v721 = vpop.f32.mrb[0].mxu0
        %v722 = vadd.f32 %v547, %v721
        %v723 = vpop.f32.mrb[0].mxu0
        %v724 = vadd.f32 %v551, %v723
        %725 = vmatprep.mubr.f32.mxu0 0.0
        %726 = vmatmul.mubr.f32.gmra.mrb[0].mxu0 %v479
        %v727 = vpop.f32.mrb[0].mxu0
        %v728 = vadd.f32 %v547, %v727
        %v729 = vpop.f32.mrb[0].mxu0
        %v730 = vadd.f32 %v551, %v729
        %731 = vmatprep.mubr.f32.mxu0 0.0
        %732 = vmatmul.mubr.f32.gmra.mrb[0].mxu0 %v480
        %v733 = vpop.f32.mrb[0].mxu0
        %v734 = vadd.f32 %v547, %v733
        %v735 = vpop.f32.mrb[0].mxu0
        %v736 = vadd.f32 %v551, %v735
        %737 = vmatprep.mubr.f32.mxu0 0.0
        %738 = vmatmul.mubr.f32.gmra.mrb[0].mxu0 %v481
        %v739 = vpop.f32.mrb[0].mxu0
        %v740 = vadd.f32 %v547, %v739
        %v741 = vpop.f32.mrb[0].mxu0
        %v742 = vadd.f32 %v551, %v741
        %743 = vmatprep.mubr.f32.mxu0 0.0
        %744 = vmatmul.mubr.f32.gmra.mrb[0].mxu0 %v482
        %v745 = vpop.f32.mrb[0].mxu0
        %v746 = vadd.f32 %v547, %v745
        %v747 = vpop.f32.mrb[0].mxu0
        %v748 = vadd.f32 %v551, %v747
        %749 = vmatprep.mubr.f32.mxu0 0.0
        %750 = vmatmul.mubr.f32.gmra.mrb[0].mxu0 %v483
        %v751 = vpop.f32.mrb[0].mxu0
        %v752 = vadd.f32 %v547, %v751
        %v753 = vpop.f32.mrb[0].mxu0
        %v754 = vadd.f32 %v551, %v753
        %755 = vmatprep.mubr.f32.mxu0 0.0
        %756 = vmatmul.mubr.f32.gmra.mrb[0].mxu0 %v484
        %v757 = vpop.f32.mrb[0].mxu0
        %v758 = vadd.f32 %v547, %v757
        %v759 = vpop.f32.mrb[0].mxu0
        %v760 = vadd.f32 %v551, %v759
        %761 = vmatprep.mubr.f32.mxu0 0.0
        %762 = vmatmul.mubr.f32.gmra.mrb[0].mxu0 %v485
        %v763 = vpop.f32.mrb[0].mxu0
        %v764 = vadd.f32 %v547, %v763
        %v765 = vpop.f32.mrb[0].mxu0
        %v766 = vadd.f32 %v551, %v765
        %767 = vmatprep.mubr.f32.mxu0 0.0
        %768 = vmatmul.mubr.f32.gmra.mrb[0].mxu0 %v486
        %v769 = vpop.f32.mrb[0].mxu0
        %v770 = vadd.f32 %v547, %v769
        %v771 = vpop.f32.mrb[0].mxu0
        %v772 = vadd.f32 %v551, %v771
        %773 = vmatprep.mubr.f32.mxu0 0.0
        %774 = vmatmul.mubr.f32.gmra.mrb[0].mxu0 %v487
        %v775 = vpop.f32.mrb[0].mxu0
        %v776 = vadd.f32 %v547, %v775
        %v777 = vpop.f32.mrb[0].mxu0
        %v778 = vadd.f32 %v551, %v777
        %779 = vmatprep.mubr.f32.mxu0 0.0
        %780 = vmatmul.mubr.f32.gmra.mrb[0].mxu0 %v488
        %v781 = vpop.f32.mrb[0].mxu0
        %v782 = vadd.f32 %v547, %v781
        %v783 = vpop.f32.mrb[0].mxu0
        %v784 = vadd.f32 %v551, %v783
        %785 = vmatprep.mubr.f32.mxu0 0.0
        %786 = vmatmul.mubr.f32.gmra.mrb[0].mxu0 %v489
        %v787 = vpop.f32.mrb[0].mxu0
        %v788 = vadd.f32 %v547, %v787
        %v789 = vpop.f32.mrb[0].mxu0
        %v790 = vadd.f32 %v551, %v789
        %791 = vmatprep.mubr.f32.mxu0 0.0
        %792 = vmatmul.mubr.f32.gmra.mrb[0].mxu0 %v490
        %v793 = vpop.f32.mrb[0].mxu0
        %v794 = vadd.f32 %v547, %v793
        %v795 = vpop.f32.mrb[0].mxu0
        %v796 = vadd.f32 %v551, %v795
        %797 = vmatprep.mubr.f32.mxu0 0.0
        %798 = vmatmul.mubr.f32.gmra.mrb[0].mxu0 %v491
        %v799 = vpop.f32.mrb[0].mxu0
        %v800 = vadd.f32 %v547, %v799
        %v801 = vpop.f32.mrb[0].mxu0
        %v802 = vadd.f32 %v551, %v801
        %803 = vmatprep.mubr.f32.mxu0 0.0
        %804 = vmatmul.mubr.f32.gmra.mrb[0].mxu0 %v492
        %v805 = vpop.f32.mrb[0].mxu0
        %v806 = vadd.f32 %v547, %v805
        %v807 = vpop.f32.mrb[0].mxu0
        %v808 = vadd.f32 %v551, %v807
        %809 = vmatprep.mubr.f32.mxu0 0.0
        %810 = vmatmul.mubr.f32.gmra.mrb[0].mxu0 %v493
        %v811 = vpop.f32.mrb[0].mxu0
        %v812 = vadd.f32 %v547, %v811
        %v813 = vpop.f32.mrb[0].mxu0
        %v814 = vadd.f32 %v551, %v813
        %815 = vdwg.mxu0
        %816 = vmatprep.subr.mxu0 0.0
        %817 = vmatpush1.msra.mxu0 %v496
        %818 = vmatprep.subr.mxu0 0.0
        %819 = vmatpush1.msra.mxu0 %v499
        %820 = vmatprep.subr.mxu0 0.0
        %821 = vmatpush1.msra.mxu0 %v502
        %822 = vmatprep.subr.mxu0 0.0
        %823 = vmatpush1.msra.mxu0 %v505
        %824 = vmatprep.subr.mxu0 0.0
        %825 = vmatpush1.msra.mxu0 %v508
        %826 = vmatprep.subr.mxu0 0.0
        %827 = vmatpush1.msra.mxu0 %v511
        %828 = vmatprep.subr.mxu0 0.0
        %829 = vmatpush1.msra.mxu0 %v514
        %830 = vmatprep.subr.mxu0 0.0
        %831 = vmatpush1.msra.mxu0 %v517
        %832 = vmatprep.subr.mxu0 0.0
        %833 = vmatpush1.msra.mxu0 %v520
        %834 = vmatprep.subr.mxu0 0.0
        %835 = vmatpush1.msra.mxu0 %v523
        %836 = vmatprep.subr.mxu0 0.0
        %837 = vmatpush1.msra.mxu0 %v526
        %838 = vmatprep.subr.mxu0 0.0
        %839 = vmatpush1.msra.mxu0 %v529
        %840 = vmatprep.subr.mxu0 0.0
        %841 = vmatpush1.msra.mxu0 %v532
        %842 = vmatprep.subr.mxu0 0.0
        %843 = vmatpush1.msra.mxu0 %v535
        %844 = vmatprep.subr.mxu0 0.0
        %845 = vmatpush1.msra.mxu0 %v538
        %846 = vmatprep.subr.mxu0 0.0
        %847 = vmatpush1.msra.mxu0 %v541
        %848 = vmatprep.subr.mxu0 0.0
        %849 = vmatpush1.msra.mxu0 0.0
        %850 = vmatprep.subr.mxu0 0.0
        %851 = vmatpush1.msra.mxu0 0.0
        %852 = vmatprep.subr.mxu0 0.0
        %853 = vmatpush1.msra.mxu0 0.0
        %854 = vmatprep.subr.mxu0 0.0
        %855 = vmatpush1.msra.mxu0 0.0
        %856 = vmatprep.subr.mxu0 0.0
        %857 = vmatpush1.msra.mxu0 0.0
        %858 = vmatprep.subr.mxu0 0.0
        %859 = vmatpush1.msra.mxu0 0.0
        %860 = vmatprep.subr.mxu0 0.0
        %861 = vmatpush1.msra.mxu0 0.0
        %862 = vmatprep.subr.mxu0 0.0
        %863 = vmatpush1.msra.mxu0 0.0
        %864 = vmatprep.subr.mxu0 0.0
        %865 = vmatpush1.msra.mxu0 0.0
        %866 = vmatprep.subr.mxu0 0.0
        %867 = vmatpush1.msra.mxu0 0.0
        %868 = vmatprep.subr.mxu0 0.0
        %869 = vmatpush1.msra.mxu0 0.0
        %870 = vmatprep.subr.mxu0 0.0
        %871 = vmatpush1.msra.mxu0 0.0
        %872 = vmatprep.subr.mxu0 0.0
        %873 = vmatpush1.msra.mxu0 0.0
        %874 = vmatprep.subr.mxu0 0.0
        %875 = vmatpush1.msra.mxu0 0.0
        %876 = vmatprep.subr.mxu0 0.0
        %877 = vmatpush1.msra.mxu0 0.0
        %878 = vmatprep.subr.mxu0 0.0
        %879 = vmatpush1.msra.mxu0 0.0
        %880 = vmatprep.mubr.f32.mxu0 0.0
        %881 = vmatmul.mubr.f32.gmra.mrb[0].mxu0 %v462
        %v882 = vpop.f32.mrb[0].mxu0
        %v883 = vadd.f32 %v555, %v882
        %v884 = vpop.f32.mrb[0].mxu0
        %885 = vmatprep.mubr.f32.mxu0 0.0
        %886 = vmatmul.mubr.f32.gmra.mrb[0].mxu0 %v463
        %v887 = vpop.f32.mrb[0].mxu0
        %v888 = vadd.f32 %v555, %v887
        %v889 = vpop.f32.mrb[0].mxu0
        %890 = vmatprep.mubr.f32.mxu0 0.0
        %891 = vmatmul.mubr.f32.gmra.mrb[0].mxu0 %v464
        %v892 = vpop.f32.mrb[0].mxu0
        %v893 = vadd.f32 %v555, %v892
        %v894 = vpop.f32.mrb[0].mxu0
        %895 = vmatprep.mubr.f32.mxu0 0.0
        %896 = vmatmul.mubr.f32.gmra.mrb[0].mxu0 %v465
        %v897 = vpop.f32.mrb[0].mxu0
        %v898 = vadd.f32 %v555, %v897
        %v899 = vpop.f32.mrb[0].mxu0
        %900 = vmatprep.mubr.f32.mxu0 0.0
        %901 = vmatmul.mubr.f32.gmra.mrb[0].mxu0 %v466
        %v902 = vpop.f32.mrb[0].mxu0
        %v903 = vadd.f32 %v555, %v902
        %v904 = vpop.f32.mrb[0].mxu0
        %905 = vmatprep.mubr.f32.mxu0 0.0
        %906 = vmatmul.mubr.f32.gmra.mrb[0].mxu0 %v467
        %v907 = vpop.f32.mrb[0].mxu0
        %v908 = vadd.f32 %v555, %v907
        %v909 = vpop.f32.mrb[0].mxu0
        %910 = vmatprep.mubr.f32.mxu0 0.0
        %911 = vmatmul.mubr.f32.gmra.mrb[0].mxu0 %v468
        %v912 = vpop.f32.mrb[0].mxu0
        %v913 = vadd.f32 %v555, %v912
        %v914 = vpop.f32.mrb[0].mxu0
        %915 = vmatprep.mubr.f32.mxu0 0.0
        %916 = vmatmul.mubr.f32.gmra.mrb[0].mxu0 %v469
        %v917 = vpop.f32.mrb[0].mxu0
        %v918 = vadd.f32 %v555, %v917
        %v919 = vpop.f32.mrb[0].mxu0
        %920 = vmatprep.mubr.f32.mxu0 0.0
        %921 = vmatmul.mubr.f32.gmra.mrb[0].mxu0 %v470
        %v922 = vpop.f32.mrb[0].mxu0
        %v923 = vadd.f32 %v555, %v922
        %v924 = vpop.f32.mrb[0].mxu0
        %925 = vmatprep.mubr.f32.mxu0 0.0
        %926 = vmatmul.mubr.f32.gmra.mrb[0].mxu0 %v471
        %v927 = vpop.f32.mrb[0].mxu0
        %v928 = vadd.f32 %v555, %v927
        %v929 = vpop.f32.mrb[0].mxu0
        %930 = vmatprep.mubr.f32.mxu0 0.0
        %931 = vmatmul.mubr.f32.gmra.mrb[0].mxu0 %v472
        %v932 = vpop.f32.mrb[0].mxu0
        %v933 = vadd.f32 %v555, %v932
        %v934 = vpop.f32.mrb[0].mxu0
        %935 = vmatprep.mubr.f32.mxu0 0.0
        %936 = vmatmul.mubr.f32.gmra.mrb[0].mxu0 %v473
        %v937 = vpop.f32.mrb[0].mxu0
        %v938 = vadd.f32 %v555, %v937
        %v939 = vpop.f32.mrb[0].mxu0
        %940 = vmatprep.mubr.f32.mxu0 0.0
        %941 = vmatmul.mubr.f32.gmra.mrb[0].mxu0 %v474
        %v942 = vpop.f32.mrb[0].mxu0
        %v943 = vadd.f32 %v555, %v942
        %v944 = vpop.f32.mrb[0].mxu0
        %945 = vmatprep.mubr.f32.mxu0 0.0
        %946 = vmatmul.mubr.f32.gmra.mrb[0].mxu0 %v475
        %v947 = vpop.f32.mrb[0].mxu0
        %v948 = vadd.f32 %v555, %v947
        %v949 = vpop.f32.mrb[0].mxu0
        %950 = vmatprep.mubr.f32.mxu0 0.0
        %951 = vmatmul.mubr.f32.gmra.mrb[0].mxu0 %v476
        %v952 = vpop.f32.mrb[0].mxu0
        %v953 = vadd.f32 %v555, %v952
        %v954 = vpop.f32.mrb[0].mxu0
        %955 = vmatprep.mubr.f32.mxu0 0.0
        %956 = vmatmul.mubr.f32.gmra.mrb[0].mxu0 %v477
        %v957 = vpop.f32.mrb[0].mxu0
        %v958 = vadd.f32 %v555, %v957
        %v959 = vpop.f32.mrb[0].mxu0
        %960 = vmatprep.mubr.f32.mxu0 0.0
        %961 = vmatmul.mubr.f32.gmra.mrb[0].mxu0 %v478
        %v962 = vpop.f32.mrb[0].mxu0
        %v963 = vadd.f32 %v555, %v962
        %v964 = vpop.f32.mrb[0].mxu0
        %965 = vmatprep.mubr.f32.mxu0 0.0
        %966 = vmatmul.mubr.f32.gmra.mrb[0].mxu0 %v479
        %v967 = vpop.f32.mrb[0].mxu0
        %v968 = vadd.f32 %v555, %v967
        %v969 = vpop.f32.mrb[0].mxu0
        %970 = vmatprep.mubr.f32.mxu0 0.0
        %971 = vmatmul.mubr.f32.gmra.mrb[0].mxu0 %v480
        %v972 = vpop.f32.mrb[0].mxu0
        %v973 = vadd.f32 %v555, %v972
        %v974 = vpop.f32.mrb[0].mxu0
        %975 = vmatprep.mubr.f32.mxu0 0.0
        %976 = vmatmul.mubr.f32.gmra.mrb[0].mxu0 %v481
        %v977 = vpop.f32.mrb[0].mxu0
        %v978 = vadd.f32 %v555, %v977
        %v979 = vpop.f32.mrb[0].mxu0
        %980 = vmatprep.mubr.f32.mxu0 0.0
        %981 = vmatmul.mubr.f32.gmra.mrb[0].mxu0 %v482
        %v982 = vpop.f32.mrb[0].mxu0
        %v983 = vadd.f32 %v555, %v982
        %v984 = vpop.f32.mrb[0].mxu0
        %985 = vmatprep.mubr.f32.mxu0 0.0
        %986 = vmatmul.mubr.f32.gmra.mrb[0].mxu0 %v483
        %v987 = vpop.f32.mrb[0].mxu0
        %v988 = vadd.f32 %v555, %v987
        %v989 = vpop.f32.mrb[0].mxu0
        %990 = vmatprep.mubr.f32.mxu0 0.0
        %991 = vmatmul.mubr.f32.gmra.mrb[0].mxu0 %v484
        %v992 = vpop.f32.mrb[0].mxu0
        %v993 = vadd.f32 %v555, %v992
        %v994 = vpop.f32.mrb[0].mxu0
        %995 = vmatprep.mubr.f32.mxu0 0.0
        %996 = vmatmul.mubr.f32.gmra.mrb[0].mxu0 %v485
        %v997 = vpop.f32.mrb[0].mxu0
        %v998 = vadd.f32 %v555, %v997
        %v999 = vpop.f32.mrb[0].mxu0
        %1000 = vmatprep.mubr.f32.mxu0 0.0
        %1001 = vmatmul.mubr.f32.gmra.mrb[0].mxu0 %v486
        %v1002 = vpop.f32.mrb[0].mxu0
        %v1003 = vadd.f32 %v555, %v1002
        %v1004 = vpop.f32.mrb[0].mxu0
        %1005 = vmatprep.mubr.f32.mxu0 0.0
        %1006 = vmatmul.mubr.f32.gmra.mrb[0].mxu0 %v487
        %v1007 = vpop.f32.mrb[0].mxu0
        %v1008 = vadd.f32 %v555, %v1007
        %v1009 = vpop.f32.mrb[0].mxu0
        %1010 = vmatprep.mubr.f32.mxu0 0.0
        %1011 = vmatmul.mubr.f32.gmra.mrb[0].mxu0 %v488
        %v1012 = vpop.f32.mrb[0].mxu0
        %v1013 = vadd.f32 %v555, %v1012
        %v1014 = vpop.f32.mrb[0].mxu0
        %1015 = vmatprep.mubr.f32.mxu0 0.0
        %1016 = vmatmul.mubr.f32.gmra.mrb[0].mxu0 %v489
        %v1017 = vpop.f32.mrb[0].mxu0
        %v1018 = vadd.f32 %v555, %v1017
        %v1019 = vpop.f32.mrb[0].mxu0
        %1020 = vmatprep.mubr.f32.mxu0 0.0
        %1021 = vmatmul.mubr.f32.gmra.mrb[0].mxu0 %v490
        %v1022 = vpop.f32.mrb[0].mxu0
        %v1023 = vadd.f32 %v555, %v1022
        %v1024 = vpop.f32.mrb[0].mxu0
        %1025 = vmatprep.mubr.f32.mxu0 0.0
        %1026 = vmatmul.mubr.f32.gmra.mrb[0].mxu0 %v491
        %v1027 = vpop.f32.mrb[0].mxu0
        %v1028 = vadd.f32 %v555, %v1027
        %v1029 = vpop.f32.mrb[0].mxu0
        %1030 = vmatprep.mubr.f32.mxu0 0.0
        %1031 = vmatmul.mubr.f32.gmra.mrb[0].mxu0 %v492
        %v1032 = vpop.f32.mrb[0].mxu0
        %v1033 = vadd.f32 %v555, %v1032
        %v1034 = vpop.f32.mrb[0].mxu0
        %1035 = vmatprep.mubr.f32.mxu0 0.0
        %1036 = vmatmul.mubr.f32.gmra.mrb[0].mxu0 %v493
        %v1037 = vpop.f32.mrb[0].mxu0
        %v1038 = vadd.f32 %v555, %v1037
        %v1039 = vpop.f32.mrb[0].mxu0
        %1040 = vdwg.mxu0
        %1041 = vst [vmem:[%s359] sm:$0xff] %v626
        %1042 = vst [vmem:[%s359 + $0x8] sm:$0xff] %v632
        %1043 = vst [vmem:[%s359 + $0x10] sm:$0xff] %v638
        %1044 = vst [vmem:[%s359 + $0x18] sm:$0xff] %v644
        %1045 = vst [vmem:[%s359 + $0x20] sm:$0xff] %v650
        %1046 = vst [vmem:[%s359 + $0x28] sm:$0xff] %v656
        %1047 = vst [vmem:[%s359 + $0x30] sm:$0xff] %v662
        %1048 = vst [vmem:[%s359 + $0x38] sm:$0xff] %v668
        %1049 = vst [vmem:[%s359 + $0x40] sm:$0xff] %v674
        %1050 = vst [vmem:[%s359 + $0x48] sm:$0xff] %v680
        %1051 = vst [vmem:[%s359 + $0x50] sm:$0xff] %v686
        %1052 = vst [vmem:[%s359 + $0x58] sm:$0xff] %v692
        %1053 = vst [vmem:[%s359 + $0x60] sm:$0xff] %v698
        %1054 = vst [vmem:[%s359 + $0x68] sm:$0xff] %v704
        %1055 = vst [vmem:[%s359 + $0x70] sm:$0xff] %v710
        %1056 = vst [vmem:[%s359 + $0x78] sm:$0xff] %v716
        %1057 = vst [vmem:[%s359 + $0x80] sm:$0xff] %v722
        %1058 = vst [vmem:[%s359 + $0x88] sm:$0xff] %v728
        %1059 = vst [vmem:[%s359 + $0x90] sm:$0xff] %v734
        %1060 = vst [vmem:[%s359 + $0x98] sm:$0xff] %v740
        %1061 = vst [vmem:[%s359 + $0xa0] sm:$0xff] %v746
        %1062 = vst [vmem:[%s359 + $0xa8] sm:$0xff] %v752
        %1063 = vst [vmem:[%s359 + $0xb0] sm:$0xff] %v758
        %1064 = vst [vmem:[%s359 + $0xb8] sm:$0xff] %v764
        %1065 = vst [vmem:[%s359 + $0xc0] sm:$0xff] %v770
        %1066 = vst [vmem:[%s359 + $0xc8] sm:$0xff] %v776
        %1067 = vst [vmem:[%s359 + $0xd0] sm:$0xff] %v782
        %1068 = vst [vmem:[%s359 + $0xd8] sm:$0xff] %v788
        %1069 = vst [vmem:[%s359 + $0xe0] sm:$0xff] %v794
        %1070 = vst [vmem:[%s359 + $0xe8] sm:$0xff] %v800
        %1071 = vst [vmem:[%s359 + $0xf0] sm:$0xff] %v806
        %1072 = vst [vmem:[%s359 + $0xf8] sm:$0xff] %v812
        %1073 = vst [vmem:[%s366] sm:$0xff] %v628
        %1074 = vst [vmem:[%s366 + $0x8] sm:$0xff] %v634
        %1075 = vst [vmem:[%s366 + $0x10] sm:$0xff] %v640
        %1076 = vst [vmem:[%s366 + $0x18] sm:$0xff] %v646
        %1077 = vst [vmem:[%s366 + $0x20] sm:$0xff] %v652
        %1078 = vst [vmem:[%s366 + $0x28] sm:$0xff] %v658
        %1079 = vst [vmem:[%s366 + $0x30] sm:$0xff] %v664
        %1080 = vst [vmem:[%s366 + $0x38] sm:$0xff] %v670
        %1081 = vst [vmem:[%s366 + $0x40] sm:$0xff] %v676
        %1082 = vst [vmem:[%s366 + $0x48] sm:$0xff] %v682
        %1083 = vst [vmem:[%s366 + $0x50] sm:$0xff] %v688
        %1084 = vst [vmem:[%s366 + $0x58] sm:$0xff] %v694
        %1085 = vst [vmem:[%s366 + $0x60] sm:$0xff] %v700
        %1086 = vst [vmem:[%s366 + $0x68] sm:$0xff] %v706
        %1087 = vst [vmem:[%s366 + $0x70] sm:$0xff] %v712
        %1088 = vst [vmem:[%s366 + $0x78] sm:$0xff] %v718
        %1089 = vst [vmem:[%s366 + $0x80] sm:$0xff] %v724
        %1090 = vst [vmem:[%s366 + $0x88] sm:$0xff] %v730
        %1091 = vst [vmem:[%s366 + $0x90] sm:$0xff] %v736
        %1092 = vst [vmem:[%s366 + $0x98] sm:$0xff] %v742
        %1093 = vst [vmem:[%s366 + $0xa0] sm:$0xff] %v748
        %1094 = vst [vmem:[%s366 + $0xa8] sm:$0xff] %v754
        %1095 = vst [vmem:[%s366 + $0xb0] sm:$0xff] %v760
        %1096 = vst [vmem:[%s366 + $0xb8] sm:$0xff] %v766
        %1097 = vst [vmem:[%s366 + $0xc0] sm:$0xff] %v772
        %1098 = vst [vmem:[%s366 + $0xc8] sm:$0xff] %v778
        %1099 = vst [vmem:[%s366 + $0xd0] sm:$0xff] %v784
        %1100 = vst [vmem:[%s366 + $0xd8] sm:$0xff] %v790
        %1101 = vst [vmem:[%s366 + $0xe0] sm:$0xff] %v796
        %1102 = vst [vmem:[%s366 + $0xe8] sm:$0xff] %v802
        %1103 = vst [vmem:[%s366 + $0xf0] sm:$0xff] %v808
        %1104 = vst [vmem:[%s366 + $0xf8] sm:$0xff] %v814
        %1105 = vst [vmem:[%s373] sm:$0xff] %v883
        %1106 = vst [vmem:[%s373 + $0x8] sm:$0xff] %v888
        %1107 = vst [vmem:[%s373 + $0x10] sm:$0xff] %v893
        %1108 = vst [vmem:[%s373 + $0x18] sm:$0xff] %v898
        %1109 = vst [vmem:[%s373 + $0x20] sm:$0xff] %v903
        %1110 = vst [vmem:[%s373 + $0x28] sm:$0xff] %v908
        %1111 = vst [vmem:[%s373 + $0x30] sm:$0xff] %v913
        %1112 = vst [vmem:[%s373 + $0x38] sm:$0xff] %v918
        %1113 = vst [vmem:[%s373 + $0x40] sm:$0xff] %v923
        %1114 = vst [vmem:[%s373 + $0x48] sm:$0xff] %v928
        %1115 = vst [vmem:[%s373 + $0x50] sm:$0xff] %v933
        %1116 = vst [vmem:[%s373 + $0x58] sm:$0xff] %v938
        %1117 = vst [vmem:[%s373 + $0x60] sm:$0xff] %v943
        %1118 = vst [vmem:[%s373 + $0x68] sm:$0xff] %v948
        %1119 = vst [vmem:[%s373 + $0x70] sm:$0xff] %v953
        %1120 = vst [vmem:[%s373 + $0x78] sm:$0xff] %v958
        %1121 = vst [vmem:[%s373 + $0x80] sm:$0xff] %v963
        %1122 = vst [vmem:[%s373 + $0x88] sm:$0xff] %v968
        %1123 = vst [vmem:[%s373 + $0x90] sm:$0xff] %v973
        %1124 = vst [vmem:[%s373 + $0x98] sm:$0xff] %v978
        %1125 = vst [vmem:[%s373 + $0xa0] sm:$0xff] %v983
        %1126 = vst [vmem:[%s373 + $0xa8] sm:$0xff] %v988
        %1127 = vst [vmem:[%s373 + $0xb0] sm:$0xff] %v993
        %1128 = vst [vmem:[%s373 + $0xb8] sm:$0xff] %v998
        %1129 = vst [vmem:[%s373 + $0xc0] sm:$0xff] %v1003
        %1130 = vst [vmem:[%s373 + $0xc8] sm:$0xff] %v1008
        %1131 = vst [vmem:[%s373 + $0xd0] sm:$0xff] %v1013
        %1132 = vst [vmem:[%s373 + $0xd8] sm:$0xff] %v1018
        %1133 = vst [vmem:[%s373 + $0xe0] sm:$0xff] %v1023
        %1134 = vst [vmem:[%s373 + $0xe8] sm:$0xff] %v1028
        %1135 = vst [vmem:[%s373 + $0xf0] sm:$0xff] %v1033
        %1136 = vst [vmem:[%s373 + $0xf8] sm:$0xff] %v1038
        %s1137 = sand.u32 %s173, 1
        %s1138 = scalar_lea.sflag [#allocation4], %s1137
        %s1139 = sand.u32 %s173, 1
        %s1140 = smul.addr %s1139, 256
        %s1141 = scalar_lea.vmem [#allocation7], %s1140
        %s1142 = sand.u32 %s29, 1
        %s1143 = scalar_lea.sflag [#allocation9], %s1142
        %s1144 = sand.u32 %s201, 1
        %s1145 = smul.addr %s1144, 256
        %s1146 = scalar_lea.vmem [#allocation8], %s1145
        %s1147 = sand.u32 %s29, 1
        %s1148 = scalar_lea.sflag [#allocation9], %s1147
        %s1149 = sand.u32 %s229, 1
        %s1150 = smul.addr %s1149, 256
        %s1151 = scalar_lea.vmem [#allocation10], %s1150
        // Predicated region
        $region49: #{tpu_custom_call.1} parent=39 // pred_check
          %p1152 = pneg %p183
        $region50: #{tpu_custom_call.1} parent=39 // pred_check_branch
          %1154 = sbr.rel (%p1152) target = $region52
        $region51: #{tpu_custom_call.1} parent=39 // pred_region
          %s1155 = smul.u32 32, %s34
          %s1157 = ssub.s32 4096, 4096
          %1158 = vsyncadd %s1138, %s1157
          %s1159 = smul.addr %s33, 32
          %s1160 = sadd.s32 %s1155, %s1159
          %s1161 = smul.addr %s1160, 128
          %s1162 = scalar_lea.hbm %s5, %s1161
          %s1163 = sshll.u32 %s1141, 4
          %s1164 = int_to_ptr.vmem [resolvable:$true] %s1163
          %1169 = dma.vmem_to_hbm [thread:$0]  %s1164, 4096, %s1162, %s1138, 128, 128, 8
        $region52: #{tpu_custom_call.1} parent=39 // pred_fallthru
          _
        // Predicated region
        $region53: #{tpu_custom_call.1} parent=39 // pred_check
          %p1170 = pneg %p211
        $region54: #{tpu_custom_call.1} parent=39 // pred_check_branch
          %1172 = sbr.rel (%p1170) target = $region56
        $region55: #{tpu_custom_call.1} parent=39 // pred_region
          %s1173 = smul.u32 32, %s34
          %s1175 = ssub.s32 4096, 4096
          %1176 = vsyncadd %s1143, %s1175
          %s1177 = smul.addr %s33, 32
          %s1178 = sadd.s32 %s1173, %s1177
          %s1179 = smul.addr %s1178, 128
          %s1180 = scalar_lea.hbm %s6, %s1179
          %s1181 = sshll.u32 %s1146, 4
          %s1182 = int_to_ptr.vmem [resolvable:$true] %s1181
          %1187 = dma.vmem_to_hbm [thread:$0]  %s1182, 4096, %s1180, %s1143, 128, 128, 8
        $region56: #{tpu_custom_call.1} parent=39 // pred_fallthru
          _
        // Predicated region
        $region57: #{tpu_custom_call.1} parent=39 // pred_check
          %p1188 = pneg %p239
        $region58: #{tpu_custom_call.1} parent=39 // pred_check_branch
          %1190 = sbr.rel (%p1188) target = $region60
        $region59: #{tpu_custom_call.1} parent=39 // pred_region
          %s1191 = smul.u32 32, %s34
          %s1193 = ssub.s32 4096, 4096
          %1194 = vsyncadd %s1148, %s1193
          %s1195 = smul.addr %s33, 32
          %s1196 = sadd.s32 %s1191, %s1195
          %s1197 = smul.addr %s1196, 128
          %s1198 = scalar_lea.hbm %s7, %s1197
          %s1199 = sshll.u32 %s1151, 4
          %s1200 = int_to_ptr.vmem [resolvable:$true] %s1199
          %1205 = dma.vmem_to_hbm [thread:$0]  %s1200, 4096, %s1198, %s1148, 128, 128, 8
        $region60: #{tpu_custom_call.1} parent=39 // pred_fallthru
          _
      $region40: #{tpu_custom_call.1} parent=5 // pred_fallthru
        _
      %p1206 = scmp.le.s32.totalorder 2, %s24
      // Predicated region
      $region61: #{tpu_custom_call.1} parent=5 // pred_check
        %p1207 = pneg %p1206
      $region62: #{tpu_custom_call.1} parent=5 // pred_check_branch
        %1209 = sbr.rel (%p1207) target = $region64
      $region63: #{tpu_custom_call.1} parent=5 // pred_region
        %s1210 = ssub.s32 %s24, 2
        // Predicated region
        $region65: #{tpu_custom_call.1} parent=63 // pred_check
          %p1211 = pneg %p189
        $region66: #{tpu_custom_call.1} parent=63 // pred_check_branch
          %1213 = sbr.rel (%p1211) target = $region68
        $region67: #{tpu_custom_call.1} parent=63 // pred_region
          %s1214 = sand.u32 %s174, 1
          %s1215 = scalar_lea.sflag [#allocation4], %s1214
          %s1216 = sand.u32 %s174, 1
          %s1217 = smul.addr %s1216, 256
          %s1218 = scalar_lea.vmem [#allocation7], %s1217
          %1219 = dma.done %s1215, 4096
        $region68: #{tpu_custom_call.1} parent=63 // pred_fallthru
          _
        // Predicated region
        $region69: #{tpu_custom_call.1} parent=63 // pred_check
          %p1220 = pneg %p217
        $region70: #{tpu_custom_call.1} parent=63 // pred_check_branch
          %1222 = sbr.rel (%p1220) target = $region72
        $region71: #{tpu_custom_call.1} parent=63 // pred_region
          %s1223 = sand.u32 %s30, 1
          %s1224 = scalar_lea.sflag [#allocation9], %s1223
          %s1225 = sand.u32 %s202, 1
          %s1226 = smul.addr %s1225, 256
          %s1227 = scalar_lea.vmem [#allocation8], %s1226
          %1228 = dma.done %s1224, 4096
        $region72: #{tpu_custom_call.1} parent=63 // pred_fallthru
          _
        // Predicated region
        $region73: #{tpu_custom_call.1} parent=63 // pred_check
          %p1229 = pneg %p245
        $region74: #{tpu_custom_call.1} parent=63 // pred_check_branch
          %1231 = sbr.rel (%p1229) target = $region76
        $region75: #{tpu_custom_call.1} parent=63 // pred_region
          %s1232 = sand.u32 %s30, 1
          %s1233 = scalar_lea.sflag [#allocation9], %s1232
          %s1234 = sand.u32 %s230, 1
          %s1235 = smul.addr %s1234, 256
          %s1236 = scalar_lea.vmem [#allocation10], %s1235
          %1237 = dma.done %s1233, 4096
        $region76: #{tpu_custom_call.1} parent=63 // pred_fallthru
          _
      $region64: #{tpu_custom_call.1} parent=5 // pred_fallthru
        _
    $region6: #{tpu_custom_call.1} parent=1 // loop_footer
      %s28 = sadd.s32 1, %s24
    $region7: #{tpu_custom_call.1} parent=1 // loop_footer_branch
      %23 = sbr.rel target = $region3
    $region8: #{tpu_custom_call.1} parent=1 // loop_exit
      _
    %1238 = vsyncpa [#allocation3], 1
    %s1239 = scalar_lea.sflag [#allocation3], 1
    %1240 = vsyncpa %s1239, 1
    %1241 = vsyncpa [#allocation6], 1
    %1242 = vsyncpa [#allocation4], 1
    %s1243 = scalar_lea.sflag [#allocation4], 1
    %1244 = vsyncpa %s1243, 1
    %1245 = vsyncpa [#allocation9], 1
    %s1246 = scalar_lea.sflag [#allocation9], 1
    %1247 = vsyncpa %s1246, 1

</llo_original>
